<compile_context>
chip_gen: v5e
topology: v5e:2x2
jax: 0.10.0
libtpu: 0.0.40
codegen_flags: <defaults>
</compile_context>

<pallas_src>
import functools

import numpy as np
import jax
import jax.numpy as jnp
from jax import lax
from jax.experimental import pallas as pl
from jax.experimental.pallas import tpu as pltpu

VMEM = pl.BlockSpec(memory_space=pltpu.MemorySpace.VMEM)
ANY = pl.BlockSpec(memory_space=pl.ANY)


# ----------------------------- fused kernel ---------------------------------

def _fused_forward_kernel(x_ref, w1_ref, b1_ref, m1_ref, s1_ref,
                          w2_ref, b2_ref, m2_ref, s2_ref,
                          dmask_ref, bl_ref, wl_hbm_ref,
                          o_ref, wl_vmem, wl_sem, *, W):
    """Whole forward pass on VMEM-resident data (single pallas_call).

    x_ref    : (Cin_p, H*W)     channel-padded flat-spatial input (f32)
    w*_ref   : (Cout, 9*Cin_p)  stacked conv weights (bf16)
    b*_ref   : (Cout, 1)        conv biases (f32)
    m*_ref   : (9, 1, L)        per-tap edge-validity masks (f32, 0/1)
    s1_ref   : (HW1, HW2P)      0/1 pool-1 column-selection (bf16)
    s2_ref   : (HW2P, C2*S3)    0/1 pool-2 selection replicated per channel (bf16)
    dmask_ref: (C2, C2*S3)      0/1 block-diagonal flatten mask (f32)
    bl_ref   : (1, Out)         linear bias (f32)
    wl_hbm   : (C2*S3, Out)     linear weight in HBM (bf16) -> async prefetch
    o_ref    : (1, Out)         output (f32, lane-dense)
    """
    # Overlap the largest input DMA (linear weight) with the conv/pool work.
    wl_cp = pltpu.make_async_copy(wl_hbm_ref, wl_vmem, wl_sem)
    wl_cp.start()

    HW1 = x_ref.shape[1]          # conv-1 lane width (H*W)
    HW2P = s1_ref.shape[1]        # conv-2 lane width (padded to mult. of 128)
    W2 = W // 2

    def conv3x3_relu(x, w_ref, m_ref, b_ref, row_w, lanes):
        # 3x3 "same" conv: 9 rolled+masked taps stacked along sublanes ->
        # ONE MXU matmul (K = 9*Cin_p), fused bias + ReLU.
        taps = []
        for t in range(9):
            dh, dw = t // 3 - 1, t % 3 - 1
            s = dh * row_w + dw
            xs = x if s == 0 else pltpu.roll(x, (-s) % lanes, axis=1)
            taps.append(xs * m_ref[t])                 # zero out-of-image taps
        stacked = jnp.concatenate(taps, axis=0).astype(jnp.bfloat16)
        acc = jnp.dot(w_ref[...], stacked, preferred_element_type=jnp.float32)
        return jnp.maximum(acc + b_ref[...], 0.0)

    def maxpool2x2(h, row_w, lanes, sel):
        # 2x2 / stride-2 max pool: pairwise max via lane rolls (XLU), then
        # compact the kept columns with a constant 0/1 selection matmul.
        p = jnp.maximum(h, pltpu.roll(h, (-1) % lanes, axis=1))
        p = jnp.maximum(p, pltpu.roll(p, (-row_w) % lanes, axis=1))
        return jnp.dot(p.astype(jnp.bfloat16), sel,
                       preferred_element_type=jnp.float32)

    # block 1: conv(Cin->C1) + ReLU + maxpool2
    h = conv3x3_relu(x_ref[...], w1_ref, m1_ref, b1_ref, W, HW1)    # (C1, HW1)
    h = maxpool2x2(h, W, HW1, s1_ref[...])                          # (C1, HW2P)

    # block 2: conv(C1->C2) + ReLU + maxpool2.  The replicated selection makes
    # the pooled result land as T[c, c'*S3+j] = pooled[c, j] for every c'.
    # NOTE: padded lanes >= H2*W2 of the conv-2 output hold relu(b2); they are
    # never selected by s2 and never reached by the pool rolls (latent hazard
    # only if the padding / pooling geometry changes).
    h = conv3x3_relu(h, w2_ref, m2_ref, b2_ref, W2, HW2P)           # (C2, HW2P)
    h = maxpool2x2(h, W2, HW2P, s2_ref[...])                        # (C2, C2*S3)

    # flatten (PyTorch (c,h,w) order): keep the c==c' diagonal blocks and
    # reduce over sublanes -> lane-dense (1, C2*S3) feature vector.
    y_flat = jnp.sum(h * dmask_ref[...], axis=0, keepdims=True)     # (1, C2*S3)

    # Linear: single (1, C2*S3) @ (C2*S3, Out) MXU matmul on the prefetched W.
    wl_cp.wait()
    o_ref[...] = bl_ref[...] + jnp.dot(
        y_flat.astype(jnp.bfloat16), wl_vmem[...],
        preferred_element_type=jnp.float32)


# --------------------------- constant builders -------------------------------

def _conv_tap_masks(h, w, lanes):
    """(9, 1, lanes) 0/1 masks: mask[t, 0, p] = 1 iff tap t of pixel p is in-image."""
    m = np.zeros((9, 1, lanes), np.float32)
    for t in range(9):
        dh, dw = t // 3 - 1, t % 3 - 1
        for p in range(h * w):
            ph, pw = p // w, p % w
            if 0 <= ph + dh < h and 0 <= pw + dw < w:
                m[t, 0, p] = 1.0
    return m


def _pool_select_matrix(h, w, lanes_in, lanes_out, replicate=1):
    """(lanes_in, lanes_out) 0/1 matrix compacting the kept 2x2-pool columns,
    optionally replicating the same selection into `replicate` output blocks."""
    h2, w2 = h // 2, w // 2
    s = np.zeros((lanes_in, lanes_out), np.float32)
    for r in range(replicate):
        for j in range(h2 * w2):
            p = (2 * (j // w2)) * w + 2 * (j % w2)
            s[p, r * (h2 * w2) + j] = 1.0
    return s


def _flatten_diag_mask(c, s3):
    """(c, c*s3) 0/1 block-diagonal mask used for the lane-dense flatten."""
    m = np.zeros((c, c * s3), np.float32)
    for ci in range(c):
        m[ci, ci * s3:(ci + 1) * s3] = 1.0
    return m


# ------------------------------ ImageEncoder --------------------------------

class ImageEncoderPallas:
    """Scaled-down AlexNet-branch ImageEncoder.

    model  = [Conv3x3(Cin->C1)+ReLU, MaxPool2, Conv3x3(C1->C2)+ReLU, MaxPool2]
    linear = Linear(C2 * (H/4) * (W/4), out_dim)
    forward(X): features = model(X); features = linear(features.flatten())
    (flatten over ALL dims, exactly like the PyTorch code -> batch must be 1).
    """

    def __init__(self, key, cin=3, c1=8, c2=16, hw=16, out_dim=512):
        k1, k2, k3, k4, k5, k6 = jax.random.split(key, 6)
        self.w1 = 0.1 * jax.random.normal(k1, (c1, cin, 3, 3), jnp.float32)
        self.b1 = 0.1 * jax.random.normal(k2, (c1,), jnp.float32)
        self.w2 = 0.1 * jax.random.normal(k3, (c2, c1, 3, 3), jnp.float32)
        self.b2 = 0.1 * jax.random.normal(k4, (c2,), jnp.float32)
        H = W = hw
        H2, W2 = H // 2, W // 2
        H3, W3 = H2 // 2, W2 // 2
        S3 = H3 * W3
        feat_dim = c2 * S3
        self.wl = 0.05 * jax.random.normal(k5, (out_dim, feat_dim), jnp.float32)
        self.bl = 0.05 * jax.random.normal(k6, (out_dim,), jnp.float32)

        HW1 = H * W
        assert HW1 % 128 == 0, "conv1 flat spatial must be a multiple of 128"
        assert c1 % 8 == 0, "c1 must be sublane-aligned for the stacked conv operand"
        HW2P = max(128, ((H2 * W2 + 127) // 128) * 128)   # padded layer-2 lanes
        cin_p = ((cin + 7) // 8) * 8                      # sublane-pad input chans

        self.cin, self.c1, self.c2 = cin, c1, c2
        self.cin_p = cin_p
        self.W_img, self.out_dim, self.S3 = W, out_dim, S3

        # ---- one-time rearrangement into the fused kernel's layouts ----
        def stack_w(w, cout, cin_eff, cin_pad):
            # (cout, cin_eff, 3, 3) -> (cout, 9*cin_pad): one slab per 3x3 tap,
            # zero-filled padding channels.
            wn = np.asarray(w)
            ws = np.zeros((cout, 9 * cin_pad), np.float32)
            for t in range(9):
                kh, kw = t // 3, t % 3
                ws[:, t * cin_pad:t * cin_pad + cin_eff] = wn[:, :, kh, kw]
            return jnp.asarray(ws, dtype=jnp.bfloat16)

        self.w1s = stack_w(self.w1, c1, cin, cin_p)
        self.w2s = stack_w(self.w2, c2, c1, c1)
        self.b1c = self.b1.reshape(c1, 1)
        self.b2c = self.b2.reshape(c2, 1)
        self.m1 = jnp.asarray(_conv_tap_masks(H, W, HW1))
        self.m2 = jnp.asarray(_conv_tap_masks(H2, W2, HW2P))
        self.s1 = jnp.asarray(_pool_select_matrix(H, W, HW1, HW2P),
                              dtype=jnp.bfloat16)
        self.s2 = jnp.asarray(
            _pool_select_matrix(H2, W2, HW2P, c2 * S3, replicate=c2),
            dtype=jnp.bfloat16)
        self.dmask = jnp.asarray(_flatten_diag_mask(c2, S3))
        # linear weight transposed to (feat_dim, out), rows already in the
        # PyTorch (c, h, w) flatten order produced by the kernel.
        self.wlT = self.wl.T.astype(jnp.bfloat16)
        self.blr = self.bl.reshape(1, out_dim)

        # advisory cost estimate for XLA scheduling around the custom call
        self.flops = int(2 * (c1 * (9 * cin_p) * HW1        # conv1
                              + c1 * HW1 * HW2P             # pool1 select
                              + c2 * (9 * c1) * HW2P        # conv2
                              + c2 * HW2P * (c2 * S3)       # pool2 select
                              + feat_dim * out_dim))        # linear

    def __call__(self, x):
        N, cin, H, W = x.shape
        assert N == 1, "forward() flattens ALL dims before Linear -> batch must be 1"
        assert cin == self.cin and W == self.W_img
        xf = x.reshape(cin, H * W).astype(jnp.float32)
        xf = jnp.pad(xf, ((0, self.cin_p - cin), (0, 0)))   # sublane-pad channels

        args = (xf, self.w1s, self.b1c, self.m1, self.s1,
                self.w2s, self.b2c, self.m2, self.s2,
                self.dmask, self.blr, self.wlT)
        bytes_accessed = sum(int(a.size) * a.dtype.itemsize for a in args)
        bytes_accessed += self.out_dim * 4

        kernel = functools.partial(_fused_forward_kernel, W=W)
        out = pl.pallas_call(
            kernel,
            out_shape=jax.ShapeDtypeStruct((1, self.out_dim), jnp.float32),
            in_specs=[VMEM] * 11 + [ANY],        # wl stays in HBM, prefetched
            out_specs=VMEM,
            scratch_shapes=[
                pltpu.VMEM(self.wlT.shape, jnp.bfloat16),   # wl landing buffer
                pltpu.SemaphoreType.DMA(()),
            ],
            cost_estimate=pl.CostEstimate(
                flops=self.flops, transcendentals=0,
                bytes_accessed=int(bytes_accessed)),
        )(*args)
        return out.reshape(self.out_dim)

    # pure-JAX reference of the identical forward (for correctness check)
    def reference(self, x):
        def conv_ref(x, w, b):
            y = lax.conv_general_dilated(
                x, w, window_strides=(1, 1), padding="SAME",
                dimension_numbers=("NCHW", "OIHW", "NCHW"))
            return jnp.maximum(y + b[None, :, None, None], 0.0)

        def pool_ref(x):
            return lax.reduce_window(
                x, -jnp.inf, lax.max,
                window_dimensions=(1, 1, 2, 2), window_strides=(1, 1, 2, 2),
                padding="VALID")

        h = pool_ref(conv_ref(x, self.w1, self.b1))
        h = pool_ref(conv_ref(h, self.w2, self.b2))
        return self.wl @ h.reshape(-1) + self.bl


# ---------------------------------- main -------------------------------------

if __name__ == "__main__":
    key = jax.random.PRNGKey(0)
    kx, kp = jax.random.split(key)
    # batch must be 1: forward() flattens ALL dims before the Linear layer.
    x = jax.random.normal(kx, (1, 3, 16, 16), dtype=jnp.float32)

    enc = ImageEncoderPallas(kp, cin=3, c1=8, c2=16, hw=16, out_dim=512)
    feats = enc(x)
    jax.block_until_ready(feats)

    ref = enc.reference(x)
    assert feats.shape == (512,) and feats.dtype == jnp.float32
    # bf16 MXU operands (single pass) + f32 accumulation: outputs are O(0.3-1),
    # expected abs error a few 1e-3; tolerance chosen accordingly.
    assert jnp.allclose(feats, ref, atol=3e-2, rtol=3e-2), "mismatch vs reference"

    print("KERNEL_OK")
</pallas_src>

<mosaic_0001>
module attributes {stable_mosaic.version = 11 : i64} {
  func.func @_fused_forward_kernel(%arg0: memref<8x256xf32, #tpu.memory_space<vmem>>, %arg1: memref<8x72xbf16, #tpu.memory_space<vmem>>, %arg2: memref<8x1xf32, #tpu.memory_space<vmem>>, %arg3: memref<9x1x256xf32, #tpu.memory_space<vmem>>, %arg4: memref<256x128xbf16, #tpu.memory_space<vmem>>, %arg5: memref<16x72xbf16, #tpu.memory_space<vmem>>, %arg6: memref<16x1xf32, #tpu.memory_space<vmem>>, %arg7: memref<9x1x128xf32, #tpu.memory_space<vmem>>, %arg8: memref<128x256xbf16, #tpu.memory_space<vmem>>, %arg9: memref<16x256xf32, #tpu.memory_space<vmem>>, %arg10: memref<1x512xf32, #tpu.memory_space<vmem>>, %arg11: memref<256x512xbf16, #tpu.memory_space<any>>, %arg12: memref<1x512xf32, #tpu.memory_space<vmem>>, %arg13: memref<256x512xbf16, #tpu.memory_space<vmem>>, %arg14: memref<!tpu.dma_semaphore, #tpu.memory_space<semaphore_mem>>) attributes {dimension_semantics = [], scalar_prefetch = 0 : i64, scratch_operands = 2 : i64, tpu.core_type = #tpu.core_type<tc>} {
    tpu.enqueue_dma source(%arg11 : memref<256x512xbf16, #tpu.memory_space<any>>) target(%arg13 : memref<256x512xbf16, #tpu.memory_space<vmem>>) target_semaphore(%arg14 : memref<!tpu.dma_semaphore, #tpu.memory_space<semaphore_mem>>)
    %c0 = arith.constant 0 : index
    %c0_0 = arith.constant 0 : index
    %0 = vector.load %arg0[%c0, %c0_0] : memref<8x256xf32, #tpu.memory_space<vmem>>, vector<8x256xf32>
    %c17_i32 = arith.constant 17 : i32
    %1 = tpu.dynamic_rotate %0 by %c17_i32 dim 1 : vector<8x256xf32>, i32 -> vector<8x256xf32>
    %c0_1 = arith.constant 0 : index
    %c0_2 = arith.constant 0 : index
    %c0_3 = arith.constant 0 : index
    %2 = vector.load %arg3[%c0_1, %c0_2, %c0_3] : memref<9x1x256xf32, #tpu.memory_space<vmem>>, vector<1x1x256xf32>
    %3 = vector.shape_cast %2 : vector<1x1x256xf32> to vector<1x256xf32>
    %4 = vector.broadcast %3 : vector<1x256xf32> to vector<8x256xf32>
    %5 = arith.mulf %1, %4 : vector<8x256xf32>
    %c16_i32 = arith.constant 16 : i32
    %6 = tpu.dynamic_rotate %0 by %c16_i32 dim 1 : vector<8x256xf32>, i32 -> vector<8x256xf32>
    %c1 = arith.constant 1 : index
    %c0_4 = arith.constant 0 : index
    %c0_5 = arith.constant 0 : index
    %7 = vector.load %arg3[%c1, %c0_4, %c0_5] : memref<9x1x256xf32, #tpu.memory_space<vmem>>, vector<1x1x256xf32>
    %8 = vector.shape_cast %7 : vector<1x1x256xf32> to vector<1x256xf32>
    %9 = vector.broadcast %8 : vector<1x256xf32> to vector<8x256xf32>
    %10 = arith.mulf %6, %9 : vector<8x256xf32>
    %c15_i32 = arith.constant 15 : i32
    %11 = tpu.dynamic_rotate %0 by %c15_i32 dim 1 : vector<8x256xf32>, i32 -> vector<8x256xf32>
    %c2 = arith.constant 2 : index
    %c0_6 = arith.constant 0 : index
    %c0_7 = arith.constant 0 : index
    %12 = vector.load %arg3[%c2, %c0_6, %c0_7] : memref<9x1x256xf32, #tpu.memory_space<vmem>>, vector<1x1x256xf32>
    %13 = vector.shape_cast %12 : vector<1x1x256xf32> to vector<1x256xf32>
    %14 = vector.broadcast %13 : vector<1x256xf32> to vector<8x256xf32>
    %15 = arith.mulf %11, %14 : vector<8x256xf32>
    %c1_i32 = arith.constant 1 : i32
    %16 = tpu.dynamic_rotate %0 by %c1_i32 dim 1 : vector<8x256xf32>, i32 -> vector<8x256xf32>
    %c3 = arith.constant 3 : index
    %c0_8 = arith.constant 0 : index
    %c0_9 = arith.constant 0 : index
    %17 = vector.load %arg3[%c3, %c0_8, %c0_9] : memref<9x1x256xf32, #tpu.memory_space<vmem>>, vector<1x1x256xf32>
    %18 = vector.shape_cast %17 : vector<1x1x256xf32> to vector<1x256xf32>
    %19 = vector.broadcast %18 : vector<1x256xf32> to vector<8x256xf32>
    %20 = arith.mulf %16, %19 : vector<8x256xf32>
    %c4 = arith.constant 4 : index
    %c0_10 = arith.constant 0 : index
    %c0_11 = arith.constant 0 : index
    %21 = vector.load %arg3[%c4, %c0_10, %c0_11] : memref<9x1x256xf32, #tpu.memory_space<vmem>>, vector<1x1x256xf32>
    %22 = vector.shape_cast %21 : vector<1x1x256xf32> to vector<1x256xf32>
    %23 = vector.broadcast %22 : vector<1x256xf32> to vector<8x256xf32>
    %24 = arith.mulf %0, %23 : vector<8x256xf32>
    %c255_i32 = arith.constant 255 : i32
    %25 = tpu.dynamic_rotate %0 by %c255_i32 dim 1 : vector<8x256xf32>, i32 -> vector<8x256xf32>
    %c5 = arith.constant 5 : index
    %c0_12 = arith.constant 0 : index
    %c0_13 = arith.constant 0 : index
    %26 = vector.load %arg3[%c5, %c0_12, %c0_13] : memref<9x1x256xf32, #tpu.memory_space<vmem>>, vector<1x1x256xf32>
    %27 = vector.shape_cast %26 : vector<1x1x256xf32> to vector<1x256xf32>
    %28 = vector.broadcast %27 : vector<1x256xf32> to vector<8x256xf32>
    %29 = arith.mulf %25, %28 : vector<8x256xf32>
    %c241_i32 = arith.constant 241 : i32
    %30 = tpu.dynamic_rotate %0 by %c241_i32 dim 1 : vector<8x256xf32>, i32 -> vector<8x256xf32>
    %c6 = arith.constant 6 : index
    %c0_14 = arith.constant 0 : index
    %c0_15 = arith.constant 0 : index
    %31 = vector.load %arg3[%c6, %c0_14, %c0_15] : memref<9x1x256xf32, #tpu.memory_space<vmem>>, vector<1x1x256xf32>
    %32 = vector.shape_cast %31 : vector<1x1x256xf32> to vector<1x256xf32>
    %33 = vector.broadcast %32 : vector<1x256xf32> to vector<8x256xf32>
    %34 = arith.mulf %30, %33 : vector<8x256xf32>
    %c240_i32 = arith.constant 240 : i32
    %35 = tpu.dynamic_rotate %0 by %c240_i32 dim 1 : vector<8x256xf32>, i32 -> vector<8x256xf32>
    %c7 = arith.constant 7 : index
    %c0_16 = arith.constant 0 : index
    %c0_17 = arith.constant 0 : index
    %36 = vector.load %arg3[%c7, %c0_16, %c0_17] : memref<9x1x256xf32, #tpu.memory_space<vmem>>, vector<1x1x256xf32>
    %37 = vector.shape_cast %36 : vector<1x1x256xf32> to vector<1x256xf32>
    %38 = vector.broadcast %37 : vector<1x256xf32> to vector<8x256xf32>
    %39 = arith.mulf %35, %38 : vector<8x256xf32>
    %c239_i32 = arith.constant 239 : i32
    %40 = tpu.dynamic_rotate %0 by %c239_i32 dim 1 : vector<8x256xf32>, i32 -> vector<8x256xf32>
    %c8 = arith.constant 8 : index
    %c0_18 = arith.constant 0 : index
    %c0_19 = arith.constant 0 : index
    %41 = vector.load %arg3[%c8, %c0_18, %c0_19] : memref<9x1x256xf32, #tpu.memory_space<vmem>>, vector<1x1x256xf32>
    %42 = vector.shape_cast %41 : vector<1x1x256xf32> to vector<1x256xf32>
    %43 = vector.broadcast %42 : vector<1x256xf32> to vector<8x256xf32>
    %44 = arith.mulf %40, %43 : vector<8x256xf32>
    %45 = tpu.concatenate %5, %10, %15, %20, %24, %29, %34, %39, %44 in 0 : vector<8x256xf32>, vector<8x256xf32>, vector<8x256xf32>, vector<8x256xf32>, vector<8x256xf32>, vector<8x256xf32>, vector<8x256xf32>, vector<8x256xf32>, vector<8x256xf32> -> vector<72x256xf32>
    %46 = arith.truncf %45 : vector<72x256xf32> to vector<72x256xbf16>
    %c0_20 = arith.constant 0 : index
    %c0_21 = arith.constant 0 : index
    %47 = vector.load %arg1[%c0_20, %c0_21] : memref<8x72xbf16, #tpu.memory_space<vmem>>, vector<8x72xbf16>
    %cst = arith.constant dense<0.000000e+00> : vector<8x256xf32>
    %48 = tpu.matmul %47, %46, %cst {dimension_numbers = #tpu.dot_dimension_numbers<[1], [0], [0], [1], [0, 0, 1, 1], [], []>} : vector<8x72xbf16>, vector<72x256xbf16>, vector<8x256xf32> -> vector<8x256xf32>
    %c0_22 = arith.constant 0 : index
    %c0_23 = arith.constant 0 : index
    %49 = vector.load %arg2[%c0_22, %c0_23] : memref<8x1xf32, #tpu.memory_space<vmem>>, vector<8x1xf32>
    %50 = vector.broadcast %49 : vector<8x1xf32> to vector<8x256xf32>
    %51 = arith.addf %48, %50 : vector<8x256xf32>
    %cst_24 = arith.constant 0.000000e+00 : f32
    %52 = vector.broadcast %cst_24 : f32 to vector<8x256xf32>
    %53 = arith.maximumf %51, %52 : vector<8x256xf32>
    %c0_25 = arith.constant 0 : index
    %c0_26 = arith.constant 0 : index
    %54 = vector.load %arg4[%c0_25, %c0_26] : memref<256x128xbf16, #tpu.memory_space<vmem>>, vector<256x128xbf16>
    %c255_i32_27 = arith.constant 255 : i32
    %55 = tpu.dynamic_rotate %53 by %c255_i32_27 dim 1 : vector<8x256xf32>, i32 -> vector<8x256xf32>
    %56 = arith.maximumf %53, %55 : vector<8x256xf32>
    %c240_i32_28 = arith.constant 240 : i32
    %57 = tpu.dynamic_rotate %56 by %c240_i32_28 dim 1 : vector<8x256xf32>, i32 -> vector<8x256xf32>
    %58 = arith.maximumf %56, %57 : vector<8x256xf32>
    %59 = arith.truncf %58 : vector<8x256xf32> to vector<8x256xbf16>
    %cst_29 = arith.constant dense<0.000000e+00> : vector<8x128xf32>
    %60 = tpu.matmul %59, %54, %cst_29 {dimension_numbers = #tpu.dot_dimension_numbers<[1], [0], [0], [1], [0, 0, 1, 1], [], []>} : vector<8x256xbf16>, vector<256x128xbf16>, vector<8x128xf32> -> vector<8x128xf32>
    %c9_i32 = arith.constant 9 : i32
    %61 = tpu.dynamic_rotate %60 by %c9_i32 dim 1 : vector<8x128xf32>, i32 -> vector<8x128xf32>
    %c0_30 = arith.constant 0 : index
    %c0_31 = arith.constant 0 : index
    %c0_32 = arith.constant 0 : index
    %62 = vector.load %arg7[%c0_30, %c0_31, %c0_32] : memref<9x1x128xf32, #tpu.memory_space<vmem>>, vector<1x1x128xf32>
    %63 = vector.shape_cast %62 : vector<1x1x128xf32> to vector<1x128xf32>
    %64 = vector.broadcast %63 : vector<1x128xf32> to vector<8x128xf32>
    %65 = arith.mulf %61, %64 : vector<8x128xf32>
    %c8_i32 = arith.constant 8 : i32
    %66 = tpu.dynamic_rotate %60 by %c8_i32 dim 1 : vector<8x128xf32>, i32 -> vector<8x128xf32>
    %c1_33 = arith.constant 1 : index
    %c0_34 = arith.constant 0 : index
    %c0_35 = arith.constant 0 : index
    %67 = vector.load %arg7[%c1_33, %c0_34, %c0_35] : memref<9x1x128xf32, #tpu.memory_space<vmem>>, vector<1x1x128xf32>
    %68 = vector.shape_cast %67 : vector<1x1x128xf32> to vector<1x128xf32>
    %69 = vector.broadcast %68 : vector<1x128xf32> to vector<8x128xf32>
    %70 = arith.mulf %66, %69 : vector<8x128xf32>
    %c7_i32 = arith.constant 7 : i32
    %71 = tpu.dynamic_rotate %60 by %c7_i32 dim 1 : vector<8x128xf32>, i32 -> vector<8x128xf32>
    %c2_36 = arith.constant 2 : index
    %c0_37 = arith.constant 0 : index
    %c0_38 = arith.constant 0 : index
    %72 = vector.load %arg7[%c2_36, %c0_37, %c0_38] : memref<9x1x128xf32, #tpu.memory_space<vmem>>, vector<1x1x128xf32>
    %73 = vector.shape_cast %72 : vector<1x1x128xf32> to vector<1x128xf32>
    %74 = vector.broadcast %73 : vector<1x128xf32> to vector<8x128xf32>
    %75 = arith.mulf %71, %74 : vector<8x128xf32>
    %c1_i32_39 = arith.constant 1 : i32
    %76 = tpu.dynamic_rotate %60 by %c1_i32_39 dim 1 : vector<8x128xf32>, i32 -> vector<8x128xf32>
    %c3_40 = arith.constant 3 : index
    %c0_41 = arith.constant 0 : index
    %c0_42 = arith.constant 0 : index
    %77 = vector.load %arg7[%c3_40, %c0_41, %c0_42] : memref<9x1x128xf32, #tpu.memory_space<vmem>>, vector<1x1x128xf32>
    %78 = vector.shape_cast %77 : vector<1x1x128xf32> to vector<1x128xf32>
    %79 = vector.broadcast %78 : vector<1x128xf32> to vector<8x128xf32>
    %80 = arith.mulf %76, %79 : vector<8x128xf32>
    %c4_43 = arith.constant 4 : index
    %c0_44 = arith.constant 0 : index
    %c0_45 = arith.constant 0 : index
    %81 = vector.load %arg7[%c4_43, %c0_44, %c0_45] : memref<9x1x128xf32, #tpu.memory_space<vmem>>, vector<1x1x128xf32>
    %82 = vector.shape_cast %81 : vector<1x1x128xf32> to vector<1x128xf32>
    %83 = vector.broadcast %82 : vector<1x128xf32> to vector<8x128xf32>
    %84 = arith.mulf %60, %83 : vector<8x128xf32>
    %c127_i32 = arith.constant 127 : i32
    %85 = tpu.dynamic_rotate %60 by %c127_i32 dim 1 : vector<8x128xf32>, i32 -> vector<8x128xf32>
    %c5_46 = arith.constant 5 : index
    %c0_47 = arith.constant 0 : index
    %c0_48 = arith.constant 0 : index
    %86 = vector.load %arg7[%c5_46, %c0_47, %c0_48] : memref<9x1x128xf32, #tpu.memory_space<vmem>>, vector<1x1x128xf32>
    %87 = vector.shape_cast %86 : vector<1x1x128xf32> to vector<1x128xf32>
    %88 = vector.broadcast %87 : vector<1x128xf32> to vector<8x128xf32>
    %89 = arith.mulf %85, %88 : vector<8x128xf32>
    %c121_i32 = arith.constant 121 : i32
    %90 = tpu.dynamic_rotate %60 by %c121_i32 dim 1 : vector<8x128xf32>, i32 -> vector<8x128xf32>
    %c6_49 = arith.constant 6 : index
    %c0_50 = arith.constant 0 : index
    %c0_51 = arith.constant 0 : index
    %91 = vector.load %arg7[%c6_49, %c0_50, %c0_51] : memref<9x1x128xf32, #tpu.memory_space<vmem>>, vector<1x1x128xf32>
    %92 = vector.shape_cast %91 : vector<1x1x128xf32> to vector<1x128xf32>
    %93 = vector.broadcast %92 : vector<1x128xf32> to vector<8x128xf32>
    %94 = arith.mulf %90, %93 : vector<8x128xf32>
    %c120_i32 = arith.constant 120 : i32
    %95 = tpu.dynamic_rotate %60 by %c120_i32 dim 1 : vector<8x128xf32>, i32 -> vector<8x128xf32>
    %c7_52 = arith.constant 7 : index
    %c0_53 = arith.constant 0 : index
    %c0_54 = arith.constant 0 : index
    %96 = vector.load %arg7[%c7_52, %c0_53, %c0_54] : memref<9x1x128xf32, #tpu.memory_space<vmem>>, vector<1x1x128xf32>
    %97 = vector.shape_cast %96 : vector<1x1x128xf32> to vector<1x128xf32>
    %98 = vector.broadcast %97 : vector<1x128xf32> to vector<8x128xf32>
    %99 = arith.mulf %95, %98 : vector<8x128xf32>
    %c119_i32 = arith.constant 119 : i32
    %100 = tpu.dynamic_rotate %60 by %c119_i32 dim 1 : vector<8x128xf32>, i32 -> vector<8x128xf32>
    %c8_55 = arith.constant 8 : index
    %c0_56 = arith.constant 0 : index
    %c0_57 = arith.constant 0 : index
    %101 = vector.load %arg7[%c8_55, %c0_56, %c0_57] : memref<9x1x128xf32, #tpu.memory_space<vmem>>, vector<1x1x128xf32>
    %102 = vector.shape_cast %101 : vector<1x1x128xf32> to vector<1x128xf32>
    %103 = vector.broadcast %102 : vector<1x128xf32> to vector<8x128xf32>
    %104 = arith.mulf %100, %103 : vector<8x128xf32>
    %105 = tpu.concatenate %65, %70, %75, %80, %84, %89, %94, %99, %104 in 0 : vector<8x128xf32>, vector<8x128xf32>, vector<8x128xf32>, vector<8x128xf32>, vector<8x128xf32>, vector<8x128xf32>, vector<8x128xf32>, vector<8x128xf32>, vector<8x128xf32> -> vector<72x128xf32>
    %106 = arith.truncf %105 : vector<72x128xf32> to vector<72x128xbf16>
    %c0_58 = arith.constant 0 : index
    %c0_59 = arith.constant 0 : index
    %107 = vector.load %arg5[%c0_58, %c0_59] : memref<16x72xbf16, #tpu.memory_space<vmem>>, vector<16x72xbf16>
    %cst_60 = arith.constant dense<0.000000e+00> : vector<16x128xf32>
    %108 = tpu.matmul %107, %106, %cst_60 {dimension_numbers = #tpu.dot_dimension_numbers<[1], [0], [0], [1], [0, 0, 1, 1], [], []>} : vector<16x72xbf16>, vector<72x128xbf16>, vector<16x128xf32> -> vector<16x128xf32>
    %c0_61 = arith.constant 0 : index
    %c0_62 = arith.constant 0 : index
    %109 = vector.load %arg6[%c0_61, %c0_62] : memref<16x1xf32, #tpu.memory_space<vmem>>, vector<16x1xf32>
    %110 = vector.broadcast %109 : vector<16x1xf32> to vector<16x128xf32>
    %111 = arith.addf %108, %110 : vector<16x128xf32>
    %cst_63 = arith.constant 0.000000e+00 : f32
    %112 = vector.broadcast %cst_63 : f32 to vector<16x128xf32>
    %113 = arith.maximumf %111, %112 : vector<16x128xf32>
    %c0_64 = arith.constant 0 : index
    %c0_65 = arith.constant 0 : index
    %114 = vector.load %arg8[%c0_64, %c0_65] : memref<128x256xbf16, #tpu.memory_space<vmem>>, vector<128x256xbf16>
    %c127_i32_66 = arith.constant 127 : i32
    %115 = tpu.dynamic_rotate %113 by %c127_i32_66 dim 1 : vector<16x128xf32>, i32 -> vector<16x128xf32>
    %116 = arith.maximumf %113, %115 : vector<16x128xf32>
    %c120_i32_67 = arith.constant 120 : i32
    %117 = tpu.dynamic_rotate %116 by %c120_i32_67 dim 1 : vector<16x128xf32>, i32 -> vector<16x128xf32>
    %118 = arith.maximumf %116, %117 : vector<16x128xf32>
    %119 = arith.truncf %118 : vector<16x128xf32> to vector<16x128xbf16>
    %cst_68 = arith.constant dense<0.000000e+00> : vector<16x256xf32>
    %120 = tpu.matmul %119, %114, %cst_68 {dimension_numbers = #tpu.dot_dimension_numbers<[1], [0], [0], [1], [0, 0, 1, 1], [], []>} : vector<16x128xbf16>, vector<128x256xbf16>, vector<16x256xf32> -> vector<16x256xf32>
    %c0_69 = arith.constant 0 : index
    %c0_70 = arith.constant 0 : index
    %121 = vector.load %arg9[%c0_69, %c0_70] : memref<16x256xf32, #tpu.memory_space<vmem>>, vector<16x256xf32>
    %122 = arith.mulf %120, %121 : vector<16x256xf32>
    %cst_71 = arith.constant dense<0.000000e+00> : vector<256xf32>
    %123 = vector.multi_reduction <add>, %122, %cst_71 [0] : vector<16x256xf32> to vector<256xf32>
    %124 = vector.shape_cast %123 : vector<256xf32> to vector<1x256xf32>
    tpu.wait_dma2 semaphore(%arg14 : memref<!tpu.dma_semaphore, #tpu.memory_space<semaphore_mem>>) src(%arg11 : memref<256x512xbf16, #tpu.memory_space<any>>) dst(%arg13 : memref<256x512xbf16, #tpu.memory_space<vmem>>)
    %c0_72 = arith.constant 0 : index
    %c0_73 = arith.constant 0 : index
    %125 = vector.load %arg10[%c0_72, %c0_73] : memref<1x512xf32, #tpu.memory_space<vmem>>, vector<1x512xf32>
    %126 = arith.truncf %124 : vector<1x256xf32> to vector<1x256xbf16>
    %c0_74 = arith.constant 0 : index
    %c0_75 = arith.constant 0 : index
    %127 = vector.load %arg13[%c0_74, %c0_75] : memref<256x512xbf16, #tpu.memory_space<vmem>>, vector<256x512xbf16>
    %cst_76 = arith.constant dense<0.000000e+00> : vector<1x512xf32>
    %128 = tpu.matmul %126, %127, %cst_76 {dimension_numbers = #tpu.dot_dimension_numbers<[1], [0], [0], [1], [0, 0, 1, 1], [], []>} : vector<1x256xbf16>, vector<256x512xbf16>, vector<1x512xf32> -> vector<1x512xf32>
    %129 = arith.addf %125, %128 : vector<1x512xf32>
    %c0_77 = arith.constant 0 : index
    %c0_78 = arith.constant 0 : index
    %130 = vector.load %arg12[%c0_77, %c0_78] : memref<1x512xf32, #tpu.memory_space<vmem>>, vector<1x512xf32>
    tpu.vector_store %arg12[%c0_77, %c0_78], %129 {strides = array<i32>} : memref<1x512xf32, #tpu.memory_space<vmem>>, vector<1x512xf32>,
    return
  }
}

</mosaic_0001>

<llo_original>
// kernel: tpu_custom_call.1
$region0: #{tpu_custom_call.1}
  #allocation0 [shape = 'u32[]', space=smem, size = 0x4, offset = 0x4, fixed_abs, tag = 'smem constant byte address 0x4 - core index']
  #allocation1 [shape = 'u32[72,128]{1,0:T(1,128)}', space=vmem, size = 0x9000, scoped, tag = 'internal scratch']
  #allocation2 [shape = 'bf16[256,512]{1,0:T(8,128)(2,1)}', space=vmem, size = 0x40000, scoped, tag = 'scratch operand']
  #allocation3 [shape = 's32[1]{0}', space=sflag, size = 0x4, scoped, tag = 'scratch operand']
  #allocation19 [shape = 's32[]', space=sflag, size = 0x4, offset = 0, fixed_abs, tag = 'sflag constant byte address 0x0 - dummy sync flag']
  #allocation20 [shape = 's32[]', space=sflag, size = 0x4, offset = 0, fixed_abs, tag = 'sflag constant byte address 0x0 - dummy sync flag']
  #allocation21 [shape = 'u32[]', space=smem, size = 0x4, offset = 0x44, fixed_abs, tag = 'smem constant byte address 0x44 - assertion arg 0']
  #allocation22 [shape = 'u32[]', space=smem, size = 0x4, offset = 0x48, fixed_abs, tag = 'smem constant byte address 0x48 - assertion arg 1']
  %s0 = inlined_call_operand.hbm [shape: f32[8,256], index: 0, kind: input, shape index: {}]
  %s1 = inlined_call_operand.hbm [shape: bf16[8,72], index: 1, kind: input, shape index: {}]
  %s2 = inlined_call_operand.vmem [shape: f32[8,1], index: 2, kind: input, shape index: {}]
  %s3 = inlined_call_operand.hbm [shape: f32[9,1,256], index: 3, kind: input, shape index: {}]
  %s4 = inlined_call_operand.hbm [shape: bf16[256,128], index: 4, kind: input, shape index: {}]
  %s5 = inlined_call_operand.hbm [shape: bf16[16,72], index: 5, kind: input, shape index: {}]
  %s6 = inlined_call_operand.vmem [shape: f32[16,1], index: 6, kind: input, shape index: {}]
  %s7 = inlined_call_operand.hbm [shape: f32[9,1,128], index: 7, kind: input, shape index: {}]
  %s8 = inlined_call_operand.hbm [shape: bf16[128,256], index: 8, kind: input, shape index: {}]
  %s9 = inlined_call_operand.vmem [shape: f32[16,256], index: 9, kind: input, shape index: {}]
  %s10 = inlined_call_operand.hbm [shape: f32[1,512], index: 10, kind: input, shape index: {}]
  %s11 = inlined_call_operand.hbm [shape: bf16[256,512], index: 11, kind: input, shape index: {}]
  %s12 = inlined_call_operand.hbm [shape: f32[1,512], index: 12, kind: output, shape index: {}]
  %s13 = sld [smem:[#allocation0]]
  $region90: #{tpu_custom_call.1} parent=0
    _
  %s15 = ssub.s32 1, %s13
  %s16 = scalar_select 0, %s15, %s13
  $region1: #{tpu_custom_call.1} parent=0
    #allocation4 [shape = 'u8[8192]{0}', space=vmem, size = 0x2000, scoped, tag = 'input window, operand 0, single buffered']
    #allocation5 [shape = 's32[1]{0}', space=sflag, size = 0x4, scoped, tag = 'scoped memory for tpu_custom_call.1']
    #allocation6 [shape = 's32[1]{0}', space=sflag, size = 0x4, scoped, tag = 'scoped memory for tpu_custom_call.1']
    #allocation7 [shape = 'u8[2048]{0}', space=vmem, size = 0x800, scoped, tag = 'input window, operand 1, single buffered']
    #allocation8 [shape = 's32[1]{0}', space=sflag, size = 0x4, scoped, tag = 'scoped memory for tpu_custom_call.1']
    #allocation9 [shape = 'u8[9216]{0}', space=vmem, size = 0x2400, scoped, tag = 'input window, operand 3, single buffered']
    #allocation10 [shape = 'u8[65536]{0}', space=vmem, size = 0x10000, scoped, tag = 'input window, operand 4, single buffered']
    #allocation11 [shape = 's32[1]{0}', space=sflag, size = 0x4, scoped, tag = 'scoped memory for tpu_custom_call.1']
    #allocation12 [shape = 'u8[4096]{0}', space=vmem, size = 0x1000, scoped, tag = 'input window, operand 5, single buffered']
    #allocation13 [shape = 'u8[4608]{0}', space=vmem, size = 0x1400, scoped, tag = 'input window, operand 7, single buffered']
    #allocation14 [shape = 's32[1]{0}', space=sflag, size = 0x4, scoped, tag = 'scoped memory for tpu_custom_call.1']
    #allocation15 [shape = 'u8[65536]{0}', space=vmem, size = 0x10000, scoped, tag = 'input window, operand 8, single buffered']
    #allocation16 [shape = 'u8[2048]{0}', space=vmem, size = 0x800, scoped, tag = 'input window, operand 10, single buffered']
    #allocation17 [shape = 's32[1]{0}', space=sflag, size = 0x4, scoped, tag = 'scoped memory for tpu_custom_call.1']
    #allocation18 [shape = 'u8[2048]{0}', space=vmem, size = 0x800, scoped, tag = 'output window, operand 0, single buffered']
    %17 = vsyncpa [#allocation5], 0
    %18 = vsyncpa [#allocation8], 0
    %19 = vsyncpa [#allocation11], 0
    %20 = vsyncpa [#allocation14], 0
    %21 = vsyncpa [#allocation17], 0
    %22 = vsyncpa [#allocation6], 0
    // Predicated region
    $region2: #{tpu_custom_call.1} parent=1 // pred_check
      _
    $region3: #{tpu_custom_call.1} parent=1 // pred_check_branch
      %24 = sbr.rel (0) target = $region5
    $region4: #{tpu_custom_call.1} parent=1 // pred_region
      %26 = vsyncadd [#allocation5], 0
      %s28 = sshll.u32 %s0, 4
      %s29 = int_to_ptr.hbm [resolvable:$true] %s28
      %s30 = sshll.u32 [#allocation4], 4
      %s31 = int_to_ptr.vmem [resolvable:$true] %s30
      %33 = dma.hbm_to_vmem [thread:$0]  %s29, 256, %s31, [#allocation5]
    $region5: #{tpu_custom_call.1} parent=1 // pred_fallthru
      _
    // Predicated region
    $region6: #{tpu_custom_call.1} parent=1 // pred_check
      _
    $region7: #{tpu_custom_call.1} parent=1 // pred_check_branch
      %35 = sbr.rel (0) target = $region9
    $region8: #{tpu_custom_call.1} parent=1 // pred_region
      %37 = vsyncadd [#allocation8], 0
      %s39 = sshll.u32 %s1, 4
      %s40 = int_to_ptr.hbm [resolvable:$true] %s39
      %s41 = sshll.u32 [#allocation7], 4
      %s42 = int_to_ptr.vmem [resolvable:$true] %s41
      %44 = dma.hbm_to_vmem [thread:$0]  %s40, 64, %s42, [#allocation8]
    $region9: #{tpu_custom_call.1} parent=1 // pred_fallthru
      _
    // Predicated region
    $region10: #{tpu_custom_call.1} parent=1 // pred_check
      _
    $region11: #{tpu_custom_call.1} parent=1 // pred_check_branch
      %46 = sbr.rel (0) target = $region13
    $region12: #{tpu_custom_call.1} parent=1 // pred_region
      _
    $region13: #{tpu_custom_call.1} parent=1 // pred_fallthru
      _
    // Predicated region
    $region14: #{tpu_custom_call.1} parent=1 // pred_check
      _
    $region15: #{tpu_custom_call.1} parent=1 // pred_check_branch
      %48 = sbr.rel (0) target = $region17
    $region16: #{tpu_custom_call.1} parent=1 // pred_region
      %50 = vsyncadd [#allocation8], 0
      %s51 = sshll.u32 %s3, 4
      %s52 = int_to_ptr.hbm [resolvable:$true] %s51
      %s53 = sshll.u32 [#allocation9], 4
      %s54 = int_to_ptr.vmem [resolvable:$true] %s53
      %59 = dma.hbm_to_vmem [thread:$0]  %s52, 288, %s54, [#allocation8], 32, 32, 2
    $region17: #{tpu_custom_call.1} parent=1 // pred_fallthru
      _
    // Predicated region
    $region18: #{tpu_custom_call.1} parent=1 // pred_check
      _
    $region19: #{tpu_custom_call.1} parent=1 // pred_check_branch
      %61 = sbr.rel (0) target = $region21
    $region20: #{tpu_custom_call.1} parent=1 // pred_region
      %63 = vsyncadd [#allocation11], 0
      %s64 = sshll.u32 %s4, 4
      %s65 = int_to_ptr.hbm [resolvable:$true] %s64
      %s66 = sshll.u32 [#allocation10], 4
      %s67 = int_to_ptr.vmem [resolvable:$true] %s66
      %72 = dma.hbm_to_vmem [thread:$0]  %s65, 2048, %s67, [#allocation11], 64, 64, 4
    $region21: #{tpu_custom_call.1} parent=1 // pred_fallthru
      _
    // Predicated region
    $region22: #{tpu_custom_call.1} parent=1 // pred_check
      _
    $region23: #{tpu_custom_call.1} parent=1 // pred_check_branch
      %74 = sbr.rel (0) target = $region25
    $region24: #{tpu_custom_call.1} parent=1 // pred_region
      %76 = vsyncadd [#allocation11], 0
      %s77 = sshll.u32 %s5, 4
      %s78 = int_to_ptr.hbm [resolvable:$true] %s77
      %s79 = sshll.u32 [#allocation12], 4
      %s80 = int_to_ptr.vmem [resolvable:$true] %s79
      %85 = dma.hbm_to_vmem [thread:$0]  %s78, 128, %s80, [#allocation11], 64, 64, 4
    $region25: #{tpu_custom_call.1} parent=1 // pred_fallthru
      _
    // Predicated region
    $region26: #{tpu_custom_call.1} parent=1 // pred_check
      _
    $region27: #{tpu_custom_call.1} parent=1 // pred_check_branch
      %87 = sbr.rel (0) target = $region29
    $region28: #{tpu_custom_call.1} parent=1 // pred_region
      _
    $region29: #{tpu_custom_call.1} parent=1 // pred_fallthru
      _
    // Predicated region
    $region30: #{tpu_custom_call.1} parent=1 // pred_check
      _
    $region31: #{tpu_custom_call.1} parent=1 // pred_check_branch
      %89 = sbr.rel (0) target = $region33
    $region32: #{tpu_custom_call.1} parent=1 // pred_region
      %91 = vsyncadd [#allocation14], 0
      %s92 = sshll.u32 %s7, 4
      %s93 = int_to_ptr.hbm [resolvable:$true] %s92
      %s94 = sshll.u32 [#allocation13], 4
      %s95 = int_to_ptr.vmem [resolvable:$true] %s94
      %100 = dma.hbm_to_vmem [thread:$0]  %s93, 144, %s95, [#allocation14], 16, 16, 1
    $region33: #{tpu_custom_call.1} parent=1 // pred_fallthru
      _
    // Predicated region
    $region34: #{tpu_custom_call.1} parent=1 // pred_check
      _
    $region35: #{tpu_custom_call.1} parent=1 // pred_check_branch
      %102 = sbr.rel (0) target = $region37
    $region36: #{tpu_custom_call.1} parent=1 // pred_region
      %104 = vsyncadd [#allocation14], 0
      %s105 = sshll.u32 %s8, 4
      %s106 = int_to_ptr.hbm [resolvable:$true] %s105
      %s107 = sshll.u32 [#allocation15], 4
      %s108 = int_to_ptr.vmem [resolvable:$true] %s107
      %113 = dma.hbm_to_vmem [thread:$0]  %s106, 2048, %s108, [#allocation14], 128, 128, 8
    $region37: #{tpu_custom_call.1} parent=1 // pred_fallthru
      _
    // Predicated region
    $region38: #{tpu_custom_call.1} parent=1 // pred_check
      _
    $region39: #{tpu_custom_call.1} parent=1 // pred_check_branch
      %115 = sbr.rel (0) target = $region41
    $region40: #{tpu_custom_call.1} parent=1 // pred_region
      _
    $region41: #{tpu_custom_call.1} parent=1 // pred_fallthru
      _
    // Predicated region
    $region42: #{tpu_custom_call.1} parent=1 // pred_check
      _
    $region43: #{tpu_custom_call.1} parent=1 // pred_check_branch
      %117 = sbr.rel (0) target = $region45
    $region44: #{tpu_custom_call.1} parent=1 // pred_region
      %119 = vsyncadd [#allocation17], 0
      %s121 = sshll.u32 %s10, 4
      %s122 = int_to_ptr.hbm [resolvable:$true] %s121
      %s123 = sshll.u32 [#allocation16], 4
      %s124 = int_to_ptr.vmem [resolvable:$true] %s123
      %126 = dma.hbm_to_vmem [thread:$0]  %s122, 64, %s124, [#allocation17]
    $region45: #{tpu_custom_call.1} parent=1 // pred_fallthru
      _
    // Predicated region
    $region46: #{tpu_custom_call.1} parent=1 // pred_check
      _
    $region47: #{tpu_custom_call.1} parent=1 // pred_check_branch
      %128 = sbr.rel (0) target = $region49
    $region48: #{tpu_custom_call.1} parent=1 // pred_region
      %130 = dma.done [#allocation5], 256
    $region49: #{tpu_custom_call.1} parent=1 // pred_fallthru
      _
    // Predicated region
    $region50: #{tpu_custom_call.1} parent=1 // pred_check
      _
    $region51: #{tpu_custom_call.1} parent=1 // pred_check_branch
      %132 = sbr.rel (0) target = $region53
    $region52: #{tpu_custom_call.1} parent=1 // pred_region
      %134 = dma.done [#allocation8], 64
    $region53: #{tpu_custom_call.1} parent=1 // pred_fallthru
      _
    // Predicated region
    $region54: #{tpu_custom_call.1} parent=1 // pred_check
      _
    $region55: #{tpu_custom_call.1} parent=1 // pred_check_branch
      %136 = sbr.rel (0) target = $region57
    $region56: #{tpu_custom_call.1} parent=1 // pred_region
      %138 = dma.done [#allocation8], 288
    $region57: #{tpu_custom_call.1} parent=1 // pred_fallthru
      _
    // Predicated region
    $region58: #{tpu_custom_call.1} parent=1 // pred_check
      _
    $region59: #{tpu_custom_call.1} parent=1 // pred_check_branch
      %140 = sbr.rel (0) target = $region61
    $region60: #{tpu_custom_call.1} parent=1 // pred_region
      %142 = dma.done [#allocation11], 2048
    $region61: #{tpu_custom_call.1} parent=1 // pred_fallthru
      _
    // Predicated region
    $region62: #{tpu_custom_call.1} parent=1 // pred_check
      _
    $region63: #{tpu_custom_call.1} parent=1 // pred_check_branch
      %144 = sbr.rel (0) target = $region65
    $region64: #{tpu_custom_call.1} parent=1 // pred_region
      %146 = dma.done [#allocation11], 128
    $region65: #{tpu_custom_call.1} parent=1 // pred_fallthru
      _
    // Predicated region
    $region66: #{tpu_custom_call.1} parent=1 // pred_check
      _
    $region67: #{tpu_custom_call.1} parent=1 // pred_check_branch
      %148 = sbr.rel (0) target = $region69
    $region68: #{tpu_custom_call.1} parent=1 // pred_region
      %150 = dma.done [#allocation14], 144
    $region69: #{tpu_custom_call.1} parent=1 // pred_fallthru
      _
    // Predicated region
    $region70: #{tpu_custom_call.1} parent=1 // pred_check
      _
    $region71: #{tpu_custom_call.1} parent=1 // pred_check_branch
      %152 = sbr.rel (0) target = $region73
    $region72: #{tpu_custom_call.1} parent=1 // pred_region
      %154 = dma.done [#allocation14], 2048
    $region73: #{tpu_custom_call.1} parent=1 // pred_fallthru
      _
    // Predicated region
    $region74: #{tpu_custom_call.1} parent=1 // pred_check
      _
    $region75: #{tpu_custom_call.1} parent=1 // pred_check_branch
      %156 = sbr.rel (0) target = $region77
    $region76: #{tpu_custom_call.1} parent=1 // pred_region
      %158 = dma.done [#allocation17], 64
    $region77: #{tpu_custom_call.1} parent=1 // pred_fallthru
      _
    // Predicated region
    $region78: #{tpu_custom_call.1} parent=1 // pred_check
      _
    $region79: #{tpu_custom_call.1} parent=1 // pred_check_branch
      %161 = sbr.rel target = $region81
    $region80: #{tpu_custom_call.1} parent=1 // pred_region
      %162 = sst [smem:[#allocation21]] [#allocation20]
      %163 = sst [smem:[#allocation22]] [#allocation19]
    $region81: #{tpu_custom_call.1} parent=1 // pred_fallthru
      _
    %165 = shalt.err (0)
    %s167 = sshll.u32 %s11, 4
    %s168 = int_to_ptr.hbm [resolvable:$true] %s167
    %s169 = sshll.u32 [#allocation2], 4
    %s170 = int_to_ptr.vmem [resolvable:$true] %s169
    %172 = dma.hbm_to_vmem [thread:$0]  %s168, 8192, %s170, [#allocation3]
    %v173 = vld [vmem:[#allocation4] sm:$0xff]
    %v174 = vld [vmem:[#allocation4 + $0x8] sm:$0xff]
    %175 = vrot.lane.b32.xlu0 %v173, 17
    %v176 = vpop.permute.xlu0 %175
    %177 = vrot.lane.b32.xlu0 %v174, 17
    %v178 = vpop.permute.xlu0 %177
    %v179 = vlaneseq
    %v180 = vand.u32 %v179, 127
    %vm181 = vcmp.lt.s32.totalorder %v180, 17
    %v182 = vsel %vm181, %v176, %v178
    %v183 = vsel %vm181, %v178, %v176
    %v184 = vld [vmem:[#allocation9] sm:$0x3]
    %v186 = vperm.slane %v184, 0
    %v187 = vperm.slane %v184, 1
    %v190 = vmul.f32 %v183, %v186
    %v191 = vmul.f32 %v182, %v187
    %192 = vrot.lane.b32.xlu0 %v173, 16
    %v193 = vpop.permute.xlu0 %192
    %194 = vrot.lane.b32.xlu0 %v174, 16
    %v195 = vpop.permute.xlu0 %194
    %vm196 = vcmp.lt.s32.totalorder %v180, 16
    %v197 = vsel %vm196, %v193, %v195
    %v198 = vsel %vm196, %v195, %v193
    %s199 = scalar_lea.vmem [#allocation9], 2
    %v200 = vld [vmem:[%s199] sm:$0x3]
    %v202 = vperm.slane %v200, 0
    %v203 = vperm.slane %v200, 1
    %v206 = vmul.f32 %v198, %v202
    %v207 = vmul.f32 %v197, %v203
    %208 = vrot.lane.b32.xlu0 %v173, 15
    %v209 = vpop.permute.xlu0 %208
    %210 = vrot.lane.b32.xlu0 %v174, 15
    %v211 = vpop.permute.xlu0 %210
    %vm212 = vcmp.lt.s32.totalorder %v180, 15
    %v213 = vsel %vm212, %v209, %v211
    %v214 = vsel %vm212, %v211, %v209
    %s215 = scalar_lea.vmem [#allocation9], 4
    %v216 = vld [vmem:[%s215] sm:$0x3]
    %v218 = vperm.slane %v216, 0
    %v219 = vperm.slane %v216, 1
    %v222 = vmul.f32 %v214, %v218
    %v223 = vmul.f32 %v213, %v219
    %224 = vrot.lane.b32.xlu0 %v173, 1
    %v225 = vpop.permute.xlu0 %224
    %226 = vrot.lane.b32.xlu0 %v174, 1
    %v227 = vpop.permute.xlu0 %226
    %vm228 = vcmp.lt.s32.totalorder %v180, 1
    %v229 = vsel %vm228, %v225, %v227
    %v230 = vsel %vm228, %v227, %v225
    %s231 = scalar_lea.vmem [#allocation9], 6
    %v232 = vld [vmem:[%s231] sm:$0x3]
    %v234 = vperm.slane %v232, 0
    %v235 = vperm.slane %v232, 1
    %v238 = vmul.f32 %v230, %v234
    %v239 = vmul.f32 %v229, %v235
    %s240 = scalar_lea.vmem [#allocation9], 8
    %v241 = vld [vmem:[%s240] sm:$0x3]
    %v243 = vperm.slane %v241, 0
    %v244 = vperm.slane %v241, 1
    %v247 = vmul.f32 %v173, %v243
    %v248 = vmul.f32 %v174, %v244
    %249 = vrot.lane.b32.xlu0 %v173, 127
    %v250 = vpop.permute.xlu0 %249
    %251 = vrot.lane.b32.xlu0 %v174, 127
    %v252 = vpop.permute.xlu0 %251
    %vm253 = vcmp.lt.s32.totalorder %v180, 127
    %v254 = vsel %vm253, %v250, %v252
    %v255 = vsel %vm253, %v252, %v250
    %s256 = scalar_lea.vmem [#allocation9], 10
    %v257 = vld [vmem:[%s256] sm:$0x3]
    %v259 = vperm.slane %v257, 0
    %v260 = vperm.slane %v257, 1
    %v263 = vmul.f32 %v254, %v259
    %v264 = vmul.f32 %v255, %v260
    %265 = vrot.lane.b32.xlu0 %v173, 113
    %v266 = vpop.permute.xlu0 %265
    %267 = vrot.lane.b32.xlu0 %v174, 113
    %v268 = vpop.permute.xlu0 %267
    %vm269 = vcmp.lt.s32.totalorder %v180, 113
    %v270 = vsel %vm269, %v266, %v268
    %v271 = vsel %vm269, %v268, %v266
    %s272 = scalar_lea.vmem [#allocation9], 12
    %v273 = vld [vmem:[%s272] sm:$0x3]
    %v275 = vperm.slane %v273, 0
    %v276 = vperm.slane %v273, 1
    %v279 = vmul.f32 %v270, %v275
    %v280 = vmul.f32 %v271, %v276
    %281 = vrot.lane.b32.xlu0 %v173, 112
    %v282 = vpop.permute.xlu0 %281
    %283 = vrot.lane.b32.xlu0 %v174, 112
    %v284 = vpop.permute.xlu0 %283
    %vm285 = vcmp.lt.s32.totalorder %v180, 112
    %v286 = vsel %vm285, %v282, %v284
    %v287 = vsel %vm285, %v284, %v282
    %s288 = scalar_lea.vmem [#allocation9], 14
    %v289 = vld [vmem:[%s288] sm:$0x3]
    %v291 = vperm.slane %v289, 0
    %v292 = vperm.slane %v289, 1
    %v295 = vmul.f32 %v286, %v291
    %v296 = vmul.f32 %v287, %v292
    %297 = vrot.lane.b32.xlu0 %v173, 111
    %v298 = vpop.permute.xlu0 %297
    %299 = vrot.lane.b32.xlu0 %v174, 111
    %v300 = vpop.permute.xlu0 %299
    %vm301 = vcmp.lt.s32.totalorder %v180, 111
    %v302 = vsel %vm301, %v298, %v300
    %v303 = vsel %vm301, %v300, %v298
    %s304 = scalar_lea.vmem [#allocation9], 16
    %v305 = vld [vmem:[%s304] sm:$0x3]
    %v307 = vperm.slane %v305, 0
    %v308 = vperm.slane %v305, 1
    %v311 = vmul.f32 %v302, %v307
    %v312 = vmul.f32 %v303, %v308
    %v313 = vpack.c.bf16 %v206, %v190
    %v314 = vpack.c.bf16 %v207, %v191
    %v315 = vpack.c.bf16 %v238, %v222
    %v316 = vpack.c.bf16 %v239, %v223
    %v317 = vpack.c.bf16 %v263, %v247
    %v318 = vpack.c.bf16 %v264, %v248
    %v319 = vpack.c.bf16 %v295, %v279
    %v320 = vpack.c.bf16 %v296, %v280
    %v321 = vpack.c.bf16 %v311, %v311
    %v322 = vpack.c.bf16 %v312, %v312
    %v323 = vld [vmem:[#allocation7] sm:$0xf]
    %v324 = vld [vmem:[%s2] sm:$0xff]
    %326 = vset.pattern.permute.xlu0 0
    %327 = vperm.xlu0 %326, %v324
    %v328 = vpop.permute.xlu0 %327
    %vm330 = vcmask 588800
    %v332 = vsel %vm330, %v323, 0
    %vm334 = vcmask 1043456
    %v336 = vsel %vm334, %v321, 0
    %v339 = vsel %vm334, %v322, 0
    %341 = vmatpush.bf16.msra.mxu0 0
    %342 = vmatpush.bf16.msra.mxu0 0
    %343 = vmatpush.bf16.msra.mxu0 0
    %344 = vmatpush.bf16.msra.mxu0 %v336
    %345 = vmatpush.bf16.msra.mxu0 %v319
    %346 = vmatpush.bf16.msra.mxu0 %v317
    %347 = vmatpush.bf16.msra.mxu0 %v315
    %348 = vmatpush.bf16.msra.mxu0 %v313
    %349 = vmatmul.bf16.gmra.mxu0 %v332
    %v350 = vpop.f32.mrf.mxu0
    %v351 = vadd.f32 %v328, %v350
    %v352 = vpop.f32.mrf.mxu0
    %353 = vdwg.mxu0
    %354 = vmatpush.bf16.msra.mxu0 0
    %355 = vmatpush.bf16.msra.mxu0 0
    %356 = vmatpush.bf16.msra.mxu0 0
    %357 = vmatpush.bf16.msra.mxu0 %v339
    %358 = vmatpush.bf16.msra.mxu0 %v320
    %359 = vmatpush.bf16.msra.mxu0 %v318
    %360 = vmatpush.bf16.msra.mxu0 %v316
    %361 = vmatpush.bf16.msra.mxu0 %v314
    %362 = vmatmul.bf16.gmra.mxu0 %v332
    %v363 = vpop.f32.mrf.mxu0
    %v364 = vadd.f32 %v328, %v363
    %v365 = vpop.f32.mrf.mxu0
    %366 = vdwg.mxu0
    %v367 = vmax.f32 %v351, 0.0
    %v368 = vmax.f32 %v364, 0.0
    %v369 = vld [vmem:[#allocation10] sm:$0xf]
    %v370 = vld [vmem:[#allocation10 + $0x4] sm:$0xf]
    %v371 = vld [vmem:[#allocation10 + $0x8] sm:$0xf]
    %v372 = vld [vmem:[#allocation10 + $0xc] sm:$0xf]
    %v373 = vld [vmem:[#allocation10 + $0x10] sm:$0xf]
    %v374 = vld [vmem:[#allocation10 + $0x14] sm:$0xf]
    %v375 = vld [vmem:[#allocation10 + $0x18] sm:$0xf]
    %v376 = vld [vmem:[#allocation10 + $0x1c] sm:$0xf]
    %v377 = vld [vmem:[#allocation10 + $0x20] sm:$0xf]
    %v378 = vld [vmem:[#allocation10 + $0x24] sm:$0xf]
    %v379 = vld [vmem:[#allocation10 + $0x28] sm:$0xf]
    %v380 = vld [vmem:[#allocation10 + $0x2c] sm:$0xf]
    %v381 = vld [vmem:[#allocation10 + $0x30] sm:$0xf]
    %v382 = vld [vmem:[#allocation10 + $0x34] sm:$0xf]
    %v383 = vld [vmem:[#allocation10 + $0x38] sm:$0xf]
    %v384 = vld [vmem:[#allocation10 + $0x3c] sm:$0xf]
    %v385 = vld [vmem:[#allocation10 + $0x40] sm:$0xf]
    %v386 = vld [vmem:[#allocation10 + $0x44] sm:$0xf]
    %v387 = vld [vmem:[#allocation10 + $0x48] sm:$0xf]
    %v388 = vld [vmem:[#allocation10 + $0x4c] sm:$0xf]
    %v389 = vld [vmem:[#allocation10 + $0x50] sm:$0xf]
    %v390 = vld [vmem:[#allocation10 + $0x54] sm:$0xf]
    %v391 = vld [vmem:[#allocation10 + $0x58] sm:$0xf]
    %v392 = vld [vmem:[#allocation10 + $0x5c] sm:$0xf]
    %v393 = vld [vmem:[#allocation10 + $0x60] sm:$0xf]
    %v394 = vld [vmem:[#allocation10 + $0x64] sm:$0xf]
    %v395 = vld [vmem:[#allocation10 + $0x68] sm:$0xf]
    %v396 = vld [vmem:[#allocation10 + $0x6c] sm:$0xf]
    %v397 = vld [vmem:[#allocation10 + $0x70] sm:$0xf]
    %v398 = vld [vmem:[#allocation10 + $0x74] sm:$0xf]
    %v399 = vld [vmem:[#allocation10 + $0x78] sm:$0xf]
    %v400 = vld [vmem:[#allocation10 + $0x7c] sm:$0xf]
    %401 = vrot.lane.b32.xlu0 %v367, 127
    %v402 = vpop.permute.xlu0 %401
    %403 = vrot.lane.b32.xlu0 %v368, 127
    %v404 = vpop.permute.xlu0 %403
    %v405 = vsel %vm253, %v402, %v404
    %v406 = vsel %vm253, %v404, %v402
    %v407 = vmax.f32 %v367, %v405
    %v408 = vmax.f32 %v368, %v406
    %409 = vrot.lane.b32.xlu0 %v407, 112
    %v410 = vpop.permute.xlu0 %409
    %411 = vrot.lane.b32.xlu0 %v408, 112
    %v412 = vpop.permute.xlu0 %411
    %v413 = vsel %vm285, %v410, %v412
    %v414 = vsel %vm285, %v412, %v410
    %v415 = vmax.f32 %v407, %v413
    %v416 = vmax.f32 %v408, %v414
    %v417 = vpack.c.bf16 %v415, %v415
    %v418 = vpack.c.bf16 %v416, %v416
    %v451 = vunpack.c.l.b16 %v369
    %v452 = vunpack.c.l.b16 %v370
    %v453 = vunpack.c.l.b16 %v371
    %v454 = vunpack.c.l.b16 %v372
    %v455 = vunpack.c.l.b16 %v373
    %v456 = vunpack.c.l.b16 %v374
    %v457 = vunpack.c.l.b16 %v375
    %v458 = vunpack.c.l.b16 %v376
    %v459 = vunpack.c.l.b16 %v377
    %v460 = vunpack.c.l.b16 %v378
    %v461 = vunpack.c.l.b16 %v379
    %v462 = vunpack.c.l.b16 %v380
    %v463 = vunpack.c.l.b16 %v381
    %v464 = vunpack.c.l.b16 %v382
    %v465 = vunpack.c.l.b16 %v383
    %v466 = vunpack.c.l.b16 %v384
    %v467 = vunpack.c.l.b16 %v385
    %v468 = vunpack.c.l.b16 %v386
    %v469 = vunpack.c.l.b16 %v387
    %v470 = vunpack.c.l.b16 %v388
    %v471 = vunpack.c.l.b16 %v389
    %v472 = vunpack.c.l.b16 %v390
    %v473 = vunpack.c.l.b16 %v391
    %v474 = vunpack.c.l.b16 %v392
    %v475 = vunpack.c.l.b16 %v393
    %v476 = vunpack.c.l.b16 %v394
    %v477 = vunpack.c.l.b16 %v395
    %v478 = vunpack.c.l.b16 %v396
    %v479 = vunpack.c.l.b16 %v397
    %v480 = vunpack.c.l.b16 %v398
    %v481 = vunpack.c.l.b16 %v399
    %v482 = vunpack.c.l.b16 %v400
    %v483 = vpack.c.b16 %v452, %v451
    %v484 = vpack.c.b16 %v454, %v453
    %v485 = vpack.c.b16 %v456, %v455
    %v486 = vpack.c.b16 %v458, %v457
    %v487 = vpack.c.b16 %v460, %v459
    %v488 = vpack.c.b16 %v462, %v461
    %v489 = vpack.c.b16 %v464, %v463
    %v490 = vpack.c.b16 %v466, %v465
    %v491 = vpack.c.b16 %v468, %v467
    %v492 = vpack.c.b16 %v470, %v469
    %v493 = vpack.c.b16 %v472, %v471
    %v494 = vpack.c.b16 %v474, %v473
    %v495 = vpack.c.b16 %v476, %v475
    %v496 = vpack.c.b16 %v478, %v477
    %v497 = vpack.c.b16 %v480, %v479
    %v498 = vpack.c.b16 %v482, %v481
    %515 = vmatpush.bf16.msra.mxu0 %v490
    %516 = vmatpush.bf16.msra.mxu0 %v489
    %517 = vmatpush.bf16.msra.mxu0 %v488
    %518 = vmatpush.bf16.msra.mxu0 %v487
    %519 = vmatpush.bf16.msra.mxu0 %v486
    %520 = vmatpush.bf16.msra.mxu0 %v485
    %521 = vmatpush.bf16.msra.mxu0 %v484
    %522 = vmatpush.bf16.msra.mxu0 %v483
    %523 = vmatmul.bf16.gmra.mxu0 %v417
    %v524 = vpop.f32.mrf.mxu0
    %v525 = vadd.f32 0.0, %v524
    %v526 = vpop.f32.mrf.mxu0
    %527 = vdwg.mxu0
    %528 = vmatpush.bf16.msra.mxu0 %v498
    %529 = vmatpush.bf16.msra.mxu0 %v497
    %530 = vmatpush.bf16.msra.mxu0 %v496
    %531 = vmatpush.bf16.msra.mxu0 %v495
    %532 = vmatpush.bf16.msra.mxu0 %v494
    %533 = vmatpush.bf16.msra.mxu0 %v493
    %534 = vmatpush.bf16.msra.mxu0 %v492
    %535 = vmatpush.bf16.msra.mxu0 %v491
    %536 = vmatmul.bf16.gmra.mxu0 %v418
    %v537 = vpop.f32.mrf.mxu0
    %v538 = vadd.f32 %v525, %v537
    %v539 = vpop.f32.mrf.mxu0
    %540 = vdwg.mxu0
    %541 = vrot.lane.b32.xlu0 %v538, 9
    %v542 = vpop.permute.xlu0 %541
    %v543 = vld [vmem:[#allocation13] sm:$0x1]
    %v545 = vperm.slane %v543, 0
    %v547 = vmul.f32 %v542, %v545
    %548 = vrot.lane.b32.xlu0 %v538, 8
    %v549 = vpop.permute.xlu0 %548
    %s550 = scalar_lea.vmem [#allocation13], 1
    %v551 = vld [vmem:[%s550] sm:$0x1]
    %v553 = vperm.slane %v551, 0
    %v555 = vmul.f32 %v549, %v553
    %556 = vrot.lane.b32.xlu0 %v538, 7
    %v557 = vpop.permute.xlu0 %556
    %s558 = scalar_lea.vmem [#allocation13], 2
    %v559 = vld [vmem:[%s558] sm:$0x1]
    %v561 = vperm.slane %v559, 0
    %v563 = vmul.f32 %v557, %v561
    %564 = vrot.lane.b32.xlu0 %v538, 1
    %v565 = vpop.permute.xlu0 %564
    %s566 = scalar_lea.vmem [#allocation13], 3
    %v567 = vld [vmem:[%s566] sm:$0x1]
    %v569 = vperm.slane %v567, 0
    %v571 = vmul.f32 %v565, %v569
    %s572 = scalar_lea.vmem [#allocation13], 4
    %v573 = vld [vmem:[%s572] sm:$0x1]
    %v575 = vperm.slane %v573, 0
    %v577 = vmul.f32 %v538, %v575
    %578 = vrot.lane.b32.xlu0 %v538, 127
    %v579 = vpop.permute.xlu0 %578
    %s580 = scalar_lea.vmem [#allocation13], 5
    %v581 = vld [vmem:[%s580] sm:$0x1]
    %v583 = vperm.slane %v581, 0
    %v585 = vmul.f32 %v579, %v583
    %586 = vrot.lane.b32.xlu0 %v538, 121
    %v587 = vpop.permute.xlu0 %586
    %s588 = scalar_lea.vmem [#allocation13], 6
    %v589 = vld [vmem:[%s588] sm:$0x1]
    %v591 = vperm.slane %v589, 0
    %v593 = vmul.f32 %v587, %v591
    %594 = vrot.lane.b32.xlu0 %v538, 120
    %v595 = vpop.permute.xlu0 %594
    %s596 = scalar_lea.vmem [#allocation13], 7
    %v597 = vld [vmem:[%s596] sm:$0x1]
    %v599 = vperm.slane %v597, 0
    %v601 = vmul.f32 %v595, %v599
    %602 = vrot.lane.b32.xlu0 %v538, 119
    %v603 = vpop.permute.xlu0 %602
    %s604 = scalar_lea.vmem [#allocation13], 8
    %v605 = vld [vmem:[%s604] sm:$0x1]
    %v607 = vperm.slane %v605, 0
    %v609 = vmul.f32 %v603, %v607
    %v610 = vpack.c.bf16 %v555, %v547
    %v611 = vpack.c.bf16 %v571, %v563
    %v612 = vpack.c.bf16 %v585, %v577
    %v613 = vpack.c.bf16 %v601, %v593
    %v614 = vpack.c.bf16 %v609, %v609
    %v615 = vld [vmem:[#allocation12] sm:$0xf]
    %v616 = vld [vmem:[#allocation12 + $0x4] sm:$0xf]
    %v617 = vld [vmem:[%s6] sm:$0xff]
    %v618 = vld [vmem:[%s6 + $0x8] sm:$0xff]
    %620 = vset.pattern.permute.xlu0 0
    %621 = vperm.xlu0 %620, %v617
    %v622 = vpop.permute.xlu0 %621
    %625 = vset.pattern.permute.xlu0 0
    %626 = vperm.xlu0 %625, %v618
    %v627 = vpop.permute.xlu0 %626
    %v631 = vunpack.c.l.b16 %v615
    %v632 = vunpack.c.l.b16 %v616
    %v633 = vpack.c.b16 %v632, %v631
    %v635 = vsel %vm330, %v633, 0
    %v638 = vsel %vm334, %v614, 0
    %640 = vmatpush.bf16.msra.mxu0 0
    %641 = vmatpush.bf16.msra.mxu0 0
    %642 = vmatpush.bf16.msra.mxu0 0
    %643 = vmatpush.bf16.msra.mxu0 %v638
    %644 = vmatpush.bf16.msra.mxu0 %v613
    %645 = vmatpush.bf16.msra.mxu0 %v612
    %646 = vmatpush.bf16.msra.mxu0 %v611
    %647 = vmatpush.bf16.msra.mxu0 %v610
    %648 = vmatmul.bf16.gmra.mxu0 %v635
    %v649 = vpop.f32.mrf.mxu0
    %v650 = vadd.f32 %v622, %v649
    %v651 = vpop.f32.mrf.mxu0
    %v652 = vadd.f32 %v627, %v651
    %653 = vdwg.mxu0
    %v654 = vmax.f32 %v650, 0.0
    %v655 = vmax.f32 %v652, 0.0
    %v656 = vld [vmem:[#allocation15] sm:$0xff]
    %v657 = vld [vmem:[#allocation15 + $0x8] sm:$0xff]
    %v658 = vld [vmem:[#allocation15 + $0x10] sm:$0xff]
    %v659 = vld [vmem:[#allocation15 + $0x18] sm:$0xff]
    %v660 = vld [vmem:[#allocation15 + $0x20] sm:$0xff]
    %v661 = vld [vmem:[#allocation15 + $0x28] sm:$0xff]
    %v662 = vld [vmem:[#allocation15 + $0x30] sm:$0xff]
    %v663 = vld [vmem:[#allocation15 + $0x38] sm:$0xff]
    %v664 = vld [vmem:[#allocation15 + $0x40] sm:$0xff]
    %v665 = vld [vmem:[#allocation15 + $0x48] sm:$0xff]
    %v666 = vld [vmem:[#allocation15 + $0x50] sm:$0xff]
    %v667 = vld [vmem:[#allocation15 + $0x58] sm:$0xff]
    %v668 = vld [vmem:[#allocation15 + $0x60] sm:$0xff]
    %v669 = vld [vmem:[#allocation15 + $0x68] sm:$0xff]
    %v670 = vld [vmem:[#allocation15 + $0x70] sm:$0xff]
    %v671 = vld [vmem:[#allocation15 + $0x78] sm:$0xff]
    %672 = vrot.lane.b32.xlu0 %v654, 127
    %v673 = vpop.permute.xlu0 %672
    %674 = vrot.lane.b32.xlu0 %v655, 127
    %v675 = vpop.permute.xlu0 %674
    %v676 = vmax.f32 %v654, %v673
    %v677 = vmax.f32 %v655, %v675
    %678 = vrot.lane.b32.xlu0 %v676, 120
    %v679 = vpop.permute.xlu0 %678
    %680 = vrot.lane.b32.xlu0 %v677, 120
    %v681 = vpop.permute.xlu0 %680
    %v682 = vmax.f32 %v676, %v679
    %v683 = vmax.f32 %v677, %v681
    %v684 = vpack.c.bf16 %v683, %v682
    %v701 = vunpack.c.l.b16 %v656
    %v702 = vunpack.c.h.b16 %v656
    %v703 = vunpack.c.l.b16 %v657
    %v704 = vunpack.c.h.b16 %v657
    %v705 = vunpack.c.l.b16 %v658
    %v706 = vunpack.c.h.b16 %v658
    %v707 = vunpack.c.l.b16 %v659
    %v708 = vunpack.c.h.b16 %v659
    %v709 = vunpack.c.l.b16 %v660
    %v710 = vunpack.c.h.b16 %v660
    %v711 = vunpack.c.l.b16 %v661
    %v712 = vunpack.c.h.b16 %v661
    %v713 = vunpack.c.l.b16 %v662
    %v714 = vunpack.c.h.b16 %v662
    %v715 = vunpack.c.l.b16 %v663
    %v716 = vunpack.c.h.b16 %v663
    %v717 = vunpack.c.l.b16 %v664
    %v718 = vunpack.c.h.b16 %v664
    %v719 = vunpack.c.l.b16 %v665
    %v720 = vunpack.c.h.b16 %v665
    %v721 = vunpack.c.l.b16 %v666
    %v722 = vunpack.c.h.b16 %v666
    %v723 = vunpack.c.l.b16 %v667
    %v724 = vunpack.c.h.b16 %v667
    %v725 = vunpack.c.l.b16 %v668
    %v726 = vunpack.c.h.b16 %v668
    %v727 = vunpack.c.l.b16 %v669
    %v728 = vunpack.c.h.b16 %v669
    %v729 = vunpack.c.l.b16 %v670
    %v730 = vunpack.c.h.b16 %v670
    %v731 = vunpack.c.l.b16 %v671
    %v732 = vunpack.c.h.b16 %v671
    %v733 = vpack.c.b16 %v703, %v701
    %v734 = vpack.c.b16 %v704, %v702
    %v735 = vpack.c.b16 %v707, %v705
    %v736 = vpack.c.b16 %v708, %v706
    %v737 = vpack.c.b16 %v711, %v709
    %v738 = vpack.c.b16 %v712, %v710
    %v739 = vpack.c.b16 %v715, %v713
    %v740 = vpack.c.b16 %v716, %v714
    %v741 = vpack.c.b16 %v719, %v717
    %v742 = vpack.c.b16 %v720, %v718
    %v743 = vpack.c.b16 %v723, %v721
    %v744 = vpack.c.b16 %v724, %v722
    %v745 = vpack.c.b16 %v727, %v725
    %v746 = vpack.c.b16 %v728, %v726
    %v747 = vpack.c.b16 %v731, %v729
    %v748 = vpack.c.b16 %v732, %v730
    %765 = vmatpush.bf16.msra.mxu0 %v747
    %766 = vmatpush.bf16.msra.mxu0 %v745
    %767 = vmatpush.bf16.msra.mxu0 %v743
    %768 = vmatpush.bf16.msra.mxu0 %v741
    %769 = vmatpush.bf16.msra.mxu0 %v739
    %770 = vmatpush.bf16.msra.mxu0 %v737
    %771 = vmatpush.bf16.msra.mxu0 %v735
    %772 = vmatpush.bf16.msra.mxu0 %v733
    %773 = vmatmul.bf16.gmra.mxu0 %v684
    %v774 = vpop.f32.mrf.mxu0
    %v775 = vadd.f32 0.0, %v774
    %v776 = vpop.f32.mrf.mxu0
    %v777 = vadd.f32 0.0, %v776
    %778 = vdwg.mxu0
    %779 = vmatpush.bf16.msra.mxu0 %v748
    %780 = vmatpush.bf16.msra.mxu0 %v746
    %781 = vmatpush.bf16.msra.mxu0 %v744
    %782 = vmatpush.bf16.msra.mxu0 %v742
    %783 = vmatpush.bf16.msra.mxu0 %v740
    %784 = vmatpush.bf16.msra.mxu0 %v738
    %785 = vmatpush.bf16.msra.mxu0 %v736
    %786 = vmatpush.bf16.msra.mxu0 %v734
    %787 = vmatmul.bf16.gmra.mxu0 %v684
    %v788 = vpop.f32.mrf.mxu0
    %v789 = vadd.f32 0.0, %v788
    %v790 = vpop.f32.mrf.mxu0
    %v791 = vadd.f32 0.0, %v790
    %792 = vdwg.mxu0
    %v793 = vld [vmem:[%s9] sm:$0xff]
    %v794 = vld [vmem:[%s9 + $0x8] sm:$0xff]
    %v795 = vld [vmem:[%s9 + $0x10] sm:$0xff]
    %v796 = vld [vmem:[%s9 + $0x18] sm:$0xff]
    %v797 = vmul.f32 %v775, %v793
    %v798 = vmul.f32 %v789, %v794
    %v799 = vmul.f32 %v777, %v795
    %v800 = vmul.f32 %v791, %v796
    %v801 = vadd.f32 %v797, %v799
    %v802 = vrot.slane %v801, 4
    %v803 = vadd.f32 %v801, %v802
    %v804 = vrot.slane %v803, 2
    %v805 = vadd.f32 %v803, %v804
    %v806 = vrot.slane %v805, 1
    %v807 = vadd.f32 %v805, %v806
    %v808 = vadd.f32 %v798, %v800
    %v809 = vrot.slane %v808, 4
    %v810 = vadd.f32 %v808, %v809
    %v811 = vrot.slane %v810, 2
    %v812 = vadd.f32 %v810, %v811
    %v813 = vrot.slane %v812, 1
    %v814 = vadd.f32 %v812, %v813
    %s815 = smul.u32 4, 32
    %s816 = smul.u32 %s815, 4
    %s817 = sshll.u32 %s816, 4
    %818 = dma.done [#allocation3], %s817
    %v819 = vld [vmem:[#allocation16] sm:$0xf]
    %v820 = vpack.c.bf16 %v807, %v807
    %v821 = vpack.c.bf16 %v814, %v814
    %v822 = vld [vmem:[#allocation2] sm:$0xff]
    %v823 = vld [vmem:[#allocation2 + $0x8] sm:$0xff]
    %v824 = vld [vmem:[#allocation2 + $0x10] sm:$0xff]
    %v825 = vld [vmem:[#allocation2 + $0x18] sm:$0xff]
    %v826 = vld [vmem:[#allocation2 + $0x20] sm:$0xff]
    %v827 = vld [vmem:[#allocation2 + $0x28] sm:$0xff]
    %v828 = vld [vmem:[#allocation2 + $0x30] sm:$0xff]
    %v829 = vld [vmem:[#allocation2 + $0x38] sm:$0xff]
    %v830 = vld [vmem:[#allocation2 + $0x40] sm:$0xff]
    %v831 = vld [vmem:[#allocation2 + $0x48] sm:$0xff]
    %v832 = vld [vmem:[#allocation2 + $0x50] sm:$0xff]
    %v833 = vld [vmem:[#allocation2 + $0x58] sm:$0xff]
    %v834 = vld [vmem:[#allocation2 + $0x60] sm:$0xff]
    %v835 = vld [vmem:[#allocation2 + $0x68] sm:$0xff]
    %v836 = vld [vmem:[#allocation2 + $0x70] sm:$0xff]
    %v837 = vld [vmem:[#allocation2 + $0x78] sm:$0xff]
    %v838 = vld [vmem:[#allocation2 + $0x80] sm:$0xff]
    %v839 = vld [vmem:[#allocation2 + $0x88] sm:$0xff]
    %v840 = vld [vmem:[#allocation2 + $0x90] sm:$0xff]
    %v841 = vld [vmem:[#allocation2 + $0x98] sm:$0xff]
    %v842 = vld [vmem:[#allocation2 + $0xa0] sm:$0xff]
    %v843 = vld [vmem:[#allocation2 + $0xa8] sm:$0xff]
    %v844 = vld [vmem:[#allocation2 + $0xb0] sm:$0xff]
    %v845 = vld [vmem:[#allocation2 + $0xb8] sm:$0xff]
    %v846 = vld [vmem:[#allocation2 + $0xc0] sm:$0xff]
    %v847 = vld [vmem:[#allocation2 + $0xc8] sm:$0xff]
    %v848 = vld [vmem:[#allocation2 + $0xd0] sm:$0xff]
    %v849 = vld [vmem:[#allocation2 + $0xd8] sm:$0xff]
    %v850 = vld [vmem:[#allocation2 + $0xe0] sm:$0xff]
    %v851 = vld [vmem:[#allocation2 + $0xe8] sm:$0xff]
    %v852 = vld [vmem:[#allocation2 + $0xf0] sm:$0xff]
    %v853 = vld [vmem:[#allocation2 + $0xf8] sm:$0xff]
    %v854 = vld [vmem:[#allocation2 + $0x100] sm:$0xff]
    %v855 = vld [vmem:[#allocation2 + $0x108] sm:$0xff]
    %v856 = vld [vmem:[#allocation2 + $0x110] sm:$0xff]
    %v857 = vld [vmem:[#allocation2 + $0x118] sm:$0xff]
    %v858 = vld [vmem:[#allocation2 + $0x120] sm:$0xff]
    %v859 = vld [vmem:[#allocation2 + $0x128] sm:$0xff]
    %v860 = vld [vmem:[#allocation2 + $0x130] sm:$0xff]
    %v861 = vld [vmem:[#allocation2 + $0x138] sm:$0xff]
    %v862 = vld [vmem:[#allocation2 + $0x140] sm:$0xff]
    %v863 = vld [vmem:[#allocation2 + $0x148] sm:$0xff]
    %v864 = vld [vmem:[#allocation2 + $0x150] sm:$0xff]
    %v865 = vld [vmem:[#allocation2 + $0x158] sm:$0xff]
    %v866 = vld [vmem:[#allocation2 + $0x160] sm:$0xff]
    %v867 = vld [vmem:[#allocation2 + $0x168] sm:$0xff]
    %v868 = vld [vmem:[#allocation2 + $0x170] sm:$0xff]
    %v869 = vld [vmem:[#allocation2 + $0x178] sm:$0xff]
    %v870 = vld [vmem:[#allocation2 + $0x180] sm:$0xff]
    %v871 = vld [vmem:[#allocation2 + $0x188] sm:$0xff]
    %v872 = vld [vmem:[#allocation2 + $0x190] sm:$0xff]
    %v873 = vld [vmem:[#allocation2 + $0x198] sm:$0xff]
    %v874 = vld [vmem:[#allocation2 + $0x1a0] sm:$0xff]
    %v875 = vld [vmem:[#allocation2 + $0x1a8] sm:$0xff]
    %v876 = vld [vmem:[#allocation2 + $0x1b0] sm:$0xff]
    %v877 = vld [vmem:[#allocation2 + $0x1b8] sm:$0xff]
    %v878 = vld [vmem:[#allocation2 + $0x1c0] sm:$0xff]
    %v879 = vld [vmem:[#allocation2 + $0x1c8] sm:$0xff]
    %v880 = vld [vmem:[#allocation2 + $0x1d0] sm:$0xff]
    %v881 = vld [vmem:[#allocation2 + $0x1d8] sm:$0xff]
    %v882 = vld [vmem:[#allocation2 + $0x1e0] sm:$0xff]
    %v883 = vld [vmem:[#allocation2 + $0x1e8] sm:$0xff]
    %v884 = vld [vmem:[#allocation2 + $0x1f0] sm:$0xff]
    %v885 = vld [vmem:[#allocation2 + $0x1f8] sm:$0xff]
    %v950 = vunpack.c.l.b16 %v822
    %v951 = vunpack.c.h.b16 %v822
    %v952 = vunpack.c.l.b16 %v823
    %v953 = vunpack.c.h.b16 %v823
    %v954 = vunpack.c.l.b16 %v824
    %v955 = vunpack.c.h.b16 %v824
    %v956 = vunpack.c.l.b16 %v825
    %v957 = vunpack.c.h.b16 %v825
    %v958 = vunpack.c.l.b16 %v826
    %v959 = vunpack.c.h.b16 %v826
    %v960 = vunpack.c.l.b16 %v827
    %v961 = vunpack.c.h.b16 %v827
    %v962 = vunpack.c.l.b16 %v828
    %v963 = vunpack.c.h.b16 %v828
    %v964 = vunpack.c.l.b16 %v829
    %v965 = vunpack.c.h.b16 %v829
    %v966 = vunpack.c.l.b16 %v830
    %v967 = vunpack.c.h.b16 %v830
    %v968 = vunpack.c.l.b16 %v831
    %v969 = vunpack.c.h.b16 %v831
    %v970 = vunpack.c.l.b16 %v832
    %v971 = vunpack.c.h.b16 %v832
    %v972 = vunpack.c.l.b16 %v833
    %v973 = vunpack.c.h.b16 %v833
    %v974 = vunpack.c.l.b16 %v834
    %v975 = vunpack.c.h.b16 %v834
    %v976 = vunpack.c.l.b16 %v835
    %v977 = vunpack.c.h.b16 %v835
    %v978 = vunpack.c.l.b16 %v836
    %v979 = vunpack.c.h.b16 %v836
    %v980 = vunpack.c.l.b16 %v837
    %v981 = vunpack.c.h.b16 %v837
    %v982 = vunpack.c.l.b16 %v838
    %v983 = vunpack.c.h.b16 %v838
    %v984 = vunpack.c.l.b16 %v839
    %v985 = vunpack.c.h.b16 %v839
    %v986 = vunpack.c.l.b16 %v840
    %v987 = vunpack.c.h.b16 %v840
    %v988 = vunpack.c.l.b16 %v841
    %v989 = vunpack.c.h.b16 %v841
    %v990 = vunpack.c.l.b16 %v842
    %v991 = vunpack.c.h.b16 %v842
    %v992 = vunpack.c.l.b16 %v843
    %v993 = vunpack.c.h.b16 %v843
    %v994 = vunpack.c.l.b16 %v844
    %v995 = vunpack.c.h.b16 %v844
    %v996 = vunpack.c.l.b16 %v845
    %v997 = vunpack.c.h.b16 %v845
    %v998 = vunpack.c.l.b16 %v846
    %v999 = vunpack.c.h.b16 %v846
    %v1000 = vunpack.c.l.b16 %v847
    %v1001 = vunpack.c.h.b16 %v847
    %v1002 = vunpack.c.l.b16 %v848
    %v1003 = vunpack.c.h.b16 %v848
    %v1004 = vunpack.c.l.b16 %v849
    %v1005 = vunpack.c.h.b16 %v849
    %v1006 = vunpack.c.l.b16 %v850
    %v1007 = vunpack.c.h.b16 %v850
    %v1008 = vunpack.c.l.b16 %v851
    %v1009 = vunpack.c.h.b16 %v851
    %v1010 = vunpack.c.l.b16 %v852
    %v1011 = vunpack.c.h.b16 %v852
    %v1012 = vunpack.c.l.b16 %v853
    %v1013 = vunpack.c.h.b16 %v853
    %v1014 = vunpack.c.l.b16 %v854
    %v1015 = vunpack.c.h.b16 %v854
    %v1016 = vunpack.c.l.b16 %v855
    %v1017 = vunpack.c.h.b16 %v855
    %v1018 = vunpack.c.l.b16 %v856
    %v1019 = vunpack.c.h.b16 %v856
    %v1020 = vunpack.c.l.b16 %v857
    %v1021 = vunpack.c.h.b16 %v857
    %v1022 = vunpack.c.l.b16 %v858
    %v1023 = vunpack.c.h.b16 %v858
    %v1024 = vunpack.c.l.b16 %v859
    %v1025 = vunpack.c.h.b16 %v859
    %v1026 = vunpack.c.l.b16 %v860
    %v1027 = vunpack.c.h.b16 %v860
    %v1028 = vunpack.c.l.b16 %v861
    %v1029 = vunpack.c.h.b16 %v861
    %v1030 = vunpack.c.l.b16 %v862
    %v1031 = vunpack.c.h.b16 %v862
    %v1032 = vunpack.c.l.b16 %v863
    %v1033 = vunpack.c.h.b16 %v863
    %v1034 = vunpack.c.l.b16 %v864
    %v1035 = vunpack.c.h.b16 %v864
    %v1036 = vunpack.c.l.b16 %v865
    %v1037 = vunpack.c.h.b16 %v865
    %v1038 = vunpack.c.l.b16 %v866
    %v1039 = vunpack.c.h.b16 %v866
    %v1040 = vunpack.c.l.b16 %v867
    %v1041 = vunpack.c.h.b16 %v867
    %v1042 = vunpack.c.l.b16 %v868
    %v1043 = vunpack.c.h.b16 %v868
    %v1044 = vunpack.c.l.b16 %v869
    %v1045 = vunpack.c.h.b16 %v869
    %v1046 = vunpack.c.l.b16 %v870
    %v1047 = vunpack.c.h.b16 %v870
    %v1048 = vunpack.c.l.b16 %v871
    %v1049 = vunpack.c.h.b16 %v871
    %v1050 = vunpack.c.l.b16 %v872
    %v1051 = vunpack.c.h.b16 %v872
    %v1052 = vunpack.c.l.b16 %v873
    %v1053 = vunpack.c.h.b16 %v873
    %v1054 = vunpack.c.l.b16 %v874
    %v1055 = vunpack.c.h.b16 %v874
    %v1056 = vunpack.c.l.b16 %v875
    %v1057 = vunpack.c.h.b16 %v875
    %v1058 = vunpack.c.l.b16 %v876
    %v1059 = vunpack.c.h.b16 %v876
    %v1060 = vunpack.c.l.b16 %v877
    %v1061 = vunpack.c.h.b16 %v877
    %v1062 = vunpack.c.l.b16 %v878
    %v1063 = vunpack.c.h.b16 %v878
    %v1064 = vunpack.c.l.b16 %v879
    %v1065 = vunpack.c.h.b16 %v879
    %v1066 = vunpack.c.l.b16 %v880
    %v1067 = vunpack.c.h.b16 %v880
    %v1068 = vunpack.c.l.b16 %v881
    %v1069 = vunpack.c.h.b16 %v881
    %v1070 = vunpack.c.l.b16 %v882
    %v1071 = vunpack.c.h.b16 %v882
    %v1072 = vunpack.c.l.b16 %v883
    %v1073 = vunpack.c.h.b16 %v883
    %v1074 = vunpack.c.l.b16 %v884
    %v1075 = vunpack.c.h.b16 %v884
    %v1076 = vunpack.c.l.b16 %v885
    %v1077 = vunpack.c.h.b16 %v885
    %v1078 = vpack.c.b16 %v954, %v950
    %v1079 = vpack.c.b16 %v955, %v951
    %v1080 = vpack.c.b16 %v956, %v952
    %v1081 = vpack.c.b16 %v957, %v953
    %v1082 = vpack.c.b16 %v962, %v958
    %v1083 = vpack.c.b16 %v963, %v959
    %v1084 = vpack.c.b16 %v964, %v960
    %v1085 = vpack.c.b16 %v965, %v961
    %v1086 = vpack.c.b16 %v970, %v966
    %v1087 = vpack.c.b16 %v971, %v967
    %v1088 = vpack.c.b16 %v972, %v968
    %v1089 = vpack.c.b16 %v973, %v969
    %v1090 = vpack.c.b16 %v978, %v974
    %v1091 = vpack.c.b16 %v979, %v975
    %v1092 = vpack.c.b16 %v980, %v976
    %v1093 = vpack.c.b16 %v981, %v977
    %v1094 = vpack.c.b16 %v986, %v982
    %v1095 = vpack.c.b16 %v987, %v983
    %v1096 = vpack.c.b16 %v988, %v984
    %v1097 = vpack.c.b16 %v989, %v985
    %v1098 = vpack.c.b16 %v994, %v990
    %v1099 = vpack.c.b16 %v995, %v991
    %v1100 = vpack.c.b16 %v996, %v992
    %v1101 = vpack.c.b16 %v997, %v993
    %v1102 = vpack.c.b16 %v1002, %v998
    %v1103 = vpack.c.b16 %v1003, %v999
    %v1104 = vpack.c.b16 %v1004, %v1000
    %v1105 = vpack.c.b16 %v1005, %v1001
    %v1106 = vpack.c.b16 %v1010, %v1006
    %v1107 = vpack.c.b16 %v1011, %v1007
    %v1108 = vpack.c.b16 %v1012, %v1008
    %v1109 = vpack.c.b16 %v1013, %v1009
    %v1110 = vpack.c.b16 %v1018, %v1014
    %v1111 = vpack.c.b16 %v1019, %v1015
    %v1112 = vpack.c.b16 %v1020, %v1016
    %v1113 = vpack.c.b16 %v1021, %v1017
    %v1114 = vpack.c.b16 %v1026, %v1022
    %v1115 = vpack.c.b16 %v1027, %v1023
    %v1116 = vpack.c.b16 %v1028, %v1024
    %v1117 = vpack.c.b16 %v1029, %v1025
    %v1118 = vpack.c.b16 %v1034, %v1030
    %v1119 = vpack.c.b16 %v1035, %v1031
    %v1120 = vpack.c.b16 %v1036, %v1032
    %v1121 = vpack.c.b16 %v1037, %v1033
    %v1122 = vpack.c.b16 %v1042, %v1038
    %v1123 = vpack.c.b16 %v1043, %v1039
    %v1124 = vpack.c.b16 %v1044, %v1040
    %v1125 = vpack.c.b16 %v1045, %v1041
    %v1126 = vpack.c.b16 %v1050, %v1046
    %v1127 = vpack.c.b16 %v1051, %v1047
    %v1128 = vpack.c.b16 %v1052, %v1048
    %v1129 = vpack.c.b16 %v1053, %v1049
    %v1130 = vpack.c.b16 %v1058, %v1054
    %v1131 = vpack.c.b16 %v1059, %v1055
    %v1132 = vpack.c.b16 %v1060, %v1056
    %v1133 = vpack.c.b16 %v1061, %v1057
    %v1134 = vpack.c.b16 %v1066, %v1062
    %v1135 = vpack.c.b16 %v1067, %v1063
    %v1136 = vpack.c.b16 %v1068, %v1064
    %v1137 = vpack.c.b16 %v1069, %v1065
    %v1138 = vpack.c.b16 %v1074, %v1070
    %v1139 = vpack.c.b16 %v1075, %v1071
    %v1140 = vpack.c.b16 %v1076, %v1072
    %v1141 = vpack.c.b16 %v1077, %v1073
    %1206 = vmatpush.bf16.msra.mxu0 %v1106
    %1207 = vmatpush.bf16.msra.mxu0 %v1102
    %1208 = vmatpush.bf16.msra.mxu0 %v1098
    %1209 = vmatpush.bf16.msra.mxu0 %v1094
    %1210 = vmatpush.bf16.msra.mxu0 %v1090
    %1211 = vmatpush.bf16.msra.mxu0 %v1086
    %1212 = vmatpush.bf16.msra.mxu0 %v1082
    %1213 = vmatpush.bf16.msra.mxu0 %v1078
    %1214 = vmatmul.bf16.gmra.mxu0 %v820
    %v1215 = vpop.f32.mrf.mxu0
    %v1216 = vadd.f32 0.0, %v1215
    %v1217 = vpop.f32.mrf.mxu0
    %1218 = vdwg.mxu0
    %1219 = vmatpush.bf16.msra.mxu0 %v1138
    %1220 = vmatpush.bf16.msra.mxu0 %v1134
    %1221 = vmatpush.bf16.msra.mxu0 %v1130
    %1222 = vmatpush.bf16.msra.mxu0 %v1126
    %1223 = vmatpush.bf16.msra.mxu0 %v1122
    %1224 = vmatpush.bf16.msra.mxu0 %v1118
    %1225 = vmatpush.bf16.msra.mxu0 %v1114
    %1226 = vmatpush.bf16.msra.mxu0 %v1110
    %1227 = vmatmul.bf16.gmra.mxu0 %v821
    %v1228 = vpop.f32.mrf.mxu0
    %v1229 = vadd.f32 %v1216, %v1228
    %v1230 = vpop.f32.mrf.mxu0
    %1231 = vdwg.mxu0
    %1232 = vmatpush.bf16.msra.mxu0 %v1107
    %1233 = vmatpush.bf16.msra.mxu0 %v1103
    %1234 = vmatpush.bf16.msra.mxu0 %v1099
    %1235 = vmatpush.bf16.msra.mxu0 %v1095
    %1236 = vmatpush.bf16.msra.mxu0 %v1091
    %1237 = vmatpush.bf16.msra.mxu0 %v1087
    %1238 = vmatpush.bf16.msra.mxu0 %v1083
    %1239 = vmatpush.bf16.msra.mxu0 %v1079
    %1240 = vmatmul.bf16.gmra.mxu0 %v820
    %v1241 = vpop.f32.mrf.mxu0
    %v1242 = vadd.f32 0.0, %v1241
    %v1243 = vpop.f32.mrf.mxu0
    %1244 = vdwg.mxu0
    %1245 = vmatpush.bf16.msra.mxu0 %v1139
    %1246 = vmatpush.bf16.msra.mxu0 %v1135
    %1247 = vmatpush.bf16.msra.mxu0 %v1131
    %1248 = vmatpush.bf16.msra.mxu0 %v1127
    %1249 = vmatpush.bf16.msra.mxu0 %v1123
    %1250 = vmatpush.bf16.msra.mxu0 %v1119
    %1251 = vmatpush.bf16.msra.mxu0 %v1115
    %1252 = vmatpush.bf16.msra.mxu0 %v1111
    %1253 = vmatmul.bf16.gmra.mxu0 %v821
    %v1254 = vpop.f32.mrf.mxu0
    %v1255 = vadd.f32 %v1242, %v1254
    %v1256 = vpop.f32.mrf.mxu0
    %1257 = vdwg.mxu0
    %1258 = vmatpush.bf16.msra.mxu0 %v1108
    %1259 = vmatpush.bf16.msra.mxu0 %v1104
    %1260 = vmatpush.bf16.msra.mxu0 %v1100
    %1261 = vmatpush.bf16.msra.mxu0 %v1096
    %1262 = vmatpush.bf16.msra.mxu0 %v1092
    %1263 = vmatpush.bf16.msra.mxu0 %v1088
    %1264 = vmatpush.bf16.msra.mxu0 %v1084
    %1265 = vmatpush.bf16.msra.mxu0 %v1080
    %1266 = vmatmul.bf16.gmra.mxu0 %v820
    %v1267 = vpop.f32.mrf.mxu0
    %v1268 = vadd.f32 0.0, %v1267
    %v1269 = vpop.f32.mrf.mxu0
    %1270 = vdwg.mxu0
    %1271 = vmatpush.bf16.msra.mxu0 %v1140
    %1272 = vmatpush.bf16.msra.mxu0 %v1136
    %1273 = vmatpush.bf16.msra.mxu0 %v1132
    %1274 = vmatpush.bf16.msra.mxu0 %v1128
    %1275 = vmatpush.bf16.msra.mxu0 %v1124
    %1276 = vmatpush.bf16.msra.mxu0 %v1120
    %1277 = vmatpush.bf16.msra.mxu0 %v1116
    %1278 = vmatpush.bf16.msra.mxu0 %v1112
    %1279 = vmatmul.bf16.gmra.mxu0 %v821
    %v1280 = vpop.f32.mrf.mxu0
    %v1281 = vadd.f32 %v1268, %v1280
    %v1282 = vpop.f32.mrf.mxu0
    %1283 = vdwg.mxu0
    %1284 = vmatpush.bf16.msra.mxu0 %v1109
    %1285 = vmatpush.bf16.msra.mxu0 %v1105
    %1286 = vmatpush.bf16.msra.mxu0 %v1101
    %1287 = vmatpush.bf16.msra.mxu0 %v1097
    %1288 = vmatpush.bf16.msra.mxu0 %v1093
    %1289 = vmatpush.bf16.msra.mxu0 %v1089
    %1290 = vmatpush.bf16.msra.mxu0 %v1085
    %1291 = vmatpush.bf16.msra.mxu0 %v1081
    %1292 = vmatmul.bf16.gmra.mxu0 %v820
    %v1293 = vpop.f32.mrf.mxu0
    %v1294 = vadd.f32 0.0, %v1293
    %v1295 = vpop.f32.mrf.mxu0
    %1296 = vdwg.mxu0
    %1297 = vmatpush.bf16.msra.mxu0 %v1141
    %1298 = vmatpush.bf16.msra.mxu0 %v1137
    %1299 = vmatpush.bf16.msra.mxu0 %v1133
    %1300 = vmatpush.bf16.msra.mxu0 %v1129
    %1301 = vmatpush.bf16.msra.mxu0 %v1125
    %1302 = vmatpush.bf16.msra.mxu0 %v1121
    %1303 = vmatpush.bf16.msra.mxu0 %v1117
    %1304 = vmatpush.bf16.msra.mxu0 %v1113
    %1305 = vmatmul.bf16.gmra.mxu0 %v821
    %v1306 = vpop.f32.mrf.mxu0
    %v1307 = vadd.f32 %v1294, %v1306
    %v1308 = vpop.f32.mrf.mxu0
    %1309 = vdwg.mxu0
    %v1314 = vrot.slane %v1255, 7
    %v1315 = vrot.slane %v1281, 6
    %v1316 = vrot.slane %v1307, 5
    %vm1317 = vcmask 1040384
    %v1318 = vsel %vm1317, %v1229, %v1314
    %vm1319 = vcmask 1042434
    %v1320 = vsel %vm1319, %v1315, %v1316
    %vm1321 = vcmask 1041408
    %v1322 = vsel %vm1321, %v1318, %v1320
    %v1324 = vadd.f32 %v819, %v1322
    %v1325 = vlaneseq
    %vm1326 = vcmp.ge.s32.totalorder %v1325, 0
    %vm1327 = vcmp.lt.s32.totalorder %v1325, 512
    %vm1328 = vmand %vm1326, %vm1327
    %1329 = vst.msk [vmem:[#allocation18] sm:$0xf] %vm1328, %v1324
    // Predicated region
    $region82: #{tpu_custom_call.1} parent=1 // pred_check
      _
    $region83: #{tpu_custom_call.1} parent=1 // pred_check_branch
      %1331 = sbr.rel (0) target = $region85
    $region84: #{tpu_custom_call.1} parent=1 // pred_region
      %1333 = vsyncadd [#allocation6], 0
      %s1335 = sshll.u32 [#allocation18], 4
      %s1336 = int_to_ptr.vmem [resolvable:$true] %s1335
      %s1337 = sshll.u32 %s12, 4
      %s1338 = int_to_ptr.hbm [resolvable:$true] %s1337
      %1340 = dma.vmem_to_hbm [thread:$0]  %s1336, 64, %s1338, [#allocation6]
    $region85: #{tpu_custom_call.1} parent=1 // pred_fallthru
      _
    // Predicated region
    $region86: #{tpu_custom_call.1} parent=1 // pred_check
      _
    $region87: #{tpu_custom_call.1} parent=1 // pred_check_branch
      %1342 = sbr.rel (0) target = $region89
    $region88: #{tpu_custom_call.1} parent=1 // pred_region
      %1344 = dma.done [#allocation6], 64
    $region89: #{tpu_custom_call.1} parent=1 // pred_fallthru
      _
    %1345 = vsyncpa [#allocation5], 1
    %1346 = vsyncpa [#allocation8], 1
    %1347 = vsyncpa [#allocation11], 1
    %1348 = vsyncpa [#allocation14], 1
    %1349 = vsyncpa [#allocation17], 1
    %1350 = vsyncpa [#allocation6], 1
  %1351 = vsyncmov [#allocation3]
  %s1352 = vpop.sfrf %1351
  %p1353 = scmp.eq.s32.totalorder %s1352, 0
  %p1354 = pneg %p1353
  %1356 = shalt.err (%p1354)

</llo_original>
